<compile_context>
chip_gen: v5e
topology: v5e:2x2
jax: 0.10.0
libtpu: 0.0.40
codegen_flags: <defaults>
</compile_context>

<pallas_src>
import functools

import jax
import jax.numpy as jnp
from jax.experimental import pallas as pl
from jax.experimental.pallas import tpu as pltpu


def _boundary_mask(lane, dy, dx, H, W):
    """Valid-source mask (1, H*W) for conv tap offset (dy, dx); None if all-valid."""
    conds = []
    if dy == -1:
        conds.append(lane >= W)
    elif dy == 1:
        conds.append(lane < (H - 1) * W)
    if dx != 0:
        if W & (W - 1) == 0:                       # power-of-two fast path
            xmod = jnp.bitwise_and(lane, W - 1)
        else:
            xmod = lane % W
        conds.append(xmod != (0 if dx == -1 else W - 1))
    if not conds:
        return None
    m = conds[0]
    for c in conds[1:]:
        m = jnp.logical_and(m, c)
    return m


def _conv3x3_relu(a, w_ref, taps, W, HW):
    """relu(conv3x3(a, w)), padding=1, spatial flattened on the lane axis.

    a:     (Cin, H*W) f32
    w_ref: (9, Cout, Cin) ref, tap-major (t = kh*3 + kw)
    taps:  list of (dy, dx, mask) with mask shape (1, H*W) or None
    ->     (Cout, H*W) f32
    """
    Cout = w_ref.shape[1]
    acc = jnp.zeros((Cout, HW), jnp.float32)
    for t, (dy, dx, m) in enumerate(taps):
        d = dy * W + dx
        shifted = pltpu.roll(a, (-d) % HW, 1) if d != 0 else a
        if m is not None:
            shifted = jnp.where(m, shifted, 0.0)
        acc = acc + jnp.dot(w_ref[t], shifted,
                            preferred_element_type=jnp.float32)
    return jnp.maximum(acc, 0.0)


def _fpn_head_kernel(x_ref, w0_ref, w1_ref, o_ref, *, H, W):
    # x_ref : (1, Cin, H*W)      w0_ref: (9, Cmid, Cin)
    # o_ref : (1, Cout, H*W)     w1_ref: (9, Cout, Cmid)
    HW = H * W
    lane = jax.lax.broadcasted_iota(jnp.int32, (1, HW), 1)
    taps = []
    for dy in (-1, 0, 1):
        for dx in (-1, 0, 1):
            taps.append((dy, dx, _boundary_mask(lane, dy, dx, H, W)))

    a = x_ref[0].astype(jnp.float32)                  # (Cin, HW), lane-dense
    mid = _conv3x3_relu(a, w0_ref, taps, W, HW)       # stays on-chip
    out = _conv3x3_relu(mid, w1_ref, taps, W, HW)
    o_ref[0] = out.astype(o_ref.dtype)                # lane-dense store


@jax.jit
def fpn_head_forward(x_nchw, w0_oihw, w1_oihw):
    """FPNHead forward; input/weights follow PyTorch NCHW / OIHW conventions."""
    N, Cin, H, W = x_nchw.shape
    Cmid = w0_oihw.shape[0]
    Cout = w1_oihw.shape[0]
    assert w0_oihw.shape[2:] == (3, 3) and w1_oihw.shape[2:] == (3, 3)
    HW = H * W

    # Free reshape (NCHW is contiguous with H*W innermost); no transposes of x.
    x_flat = x_nchw.reshape(N, Cin, HW)
    # OIHW -> (tap, Cout, Cin); tiny tensors, negligible cost.
    w0_t = jnp.transpose(w0_oihw, (2, 3, 0, 1)).reshape(9, Cmid, Cin)
    w1_t = jnp.transpose(w1_oihw, (2, 3, 0, 1)).reshape(9, Cout, Cmid)

    flops = 2 * N * HW * 9 * (Cin * Cmid + Cmid * Cout)
    bytes_accessed = 4 * (x_flat.size + w0_t.size + w1_t.size + N * Cout * HW)

    out_flat = pl.pallas_call(
        functools.partial(_fpn_head_kernel, H=H, W=W),
        out_shape=jax.ShapeDtypeStruct((N, Cout, HW), x_nchw.dtype),
        grid_spec=pltpu.PrefetchScalarGridSpec(
            num_scalar_prefetch=0,
            grid=(N,),
            in_specs=[
                pl.BlockSpec((1, Cin, HW), lambda n: (n, 0, 0)),
                pl.BlockSpec((9, Cmid, Cin), lambda n: (0, 0, 0)),   # resident
                pl.BlockSpec((9, Cout, Cmid), lambda n: (0, 0, 0)),  # resident
            ],
            out_specs=pl.BlockSpec((1, Cout, HW), lambda n: (n, 0, 0)),
        ),
        compiler_params=pltpu.CompilerParams(
            dimension_semantics=("parallel",),
        ),
        cost_estimate=pl.CostEstimate(
            flops=flops, transcendentals=0, bytes_accessed=bytes_accessed),
    )(x_flat, w0_t, w1_t)

    return out_flat.reshape(N, Cout, H, W)


def _reference_forward(x_nchw, w0_oihw, w1_oihw):
    """Pure-JAX reference (lax.conv) for correctness checking."""
    dn = ("NCHW", "OIHW", "NCHW")
    y = jax.lax.conv_general_dilated(
        x_nchw, w0_oihw, (1, 1), ((1, 1), (1, 1)), dimension_numbers=dn)
    y = jnp.maximum(y, 0.0)
    y = jax.lax.conv_general_dilated(
        y, w1_oihw, (1, 1), ((1, 1), (1, 1)), dimension_numbers=dn)
    return jnp.maximum(y, 0.0)


if __name__ == "__main__":
    # FPNHead(num_in=4, num_mid=8, num_out=4), batch=2, spatial=16x16
    N, num_in, num_mid, num_out, H, W = 2, 4, 8, 4, 16, 16

    key = jax.random.PRNGKey(0)
    kx, k0, k1 = jax.random.split(key, 3)

    x = jax.random.normal(kx, (N, num_in, H, W), dtype=jnp.float32)
    w0 = jax.random.normal(k0, (num_mid, num_in, 3, 3), dtype=jnp.float32) * 0.1
    w1 = jax.random.normal(k1, (num_out, num_mid, 3, 3), dtype=jnp.float32) * 0.1

    out = jax.block_until_ready(fpn_head_forward(x, w0, w1))
    ref = _reference_forward(x, w0, w1)

    assert out.shape == (N, num_out, H, W)
    assert jnp.allclose(out, ref, atol=1e-4, rtol=1e-4), "mismatch vs reference"

    print("KERNEL_OK")
</pallas_src>

<mosaic_0001>
module attributes {stable_mosaic.version = 11 : i64} {
  func.func @_fpn_head_kernel(%arg0: i32, %arg1: memref<1x4x256xf32, #tpu.memory_space<vmem>>, %arg2: memref<9x8x4xf32, #tpu.memory_space<vmem>>, %arg3: memref<9x4x8xf32, #tpu.memory_space<vmem>>, %arg4: memref<1x4x256xf32, #tpu.memory_space<vmem>>) attributes {dimension_semantics = [#tpu.dimension_semantics<parallel>], iteration_bounds = array<i64: 2>, scalar_prefetch = 0 : i64, scratch_operands = 0 : i64, tpu.core_type = #tpu.core_type<tc>, window_params = [{transform_indices = @transform_0, window_bounds = array<i64: 1, 4, 256>}, {pipeline_mode = #tpu.pipeline_mode<synchronous>, transform_indices = @transform_1, window_bounds = array<i64: 9, 8, 4>}, {pipeline_mode = #tpu.pipeline_mode<synchronous>, transform_indices = @transform_2, window_bounds = array<i64: 9, 4, 8>}, {transform_indices = @transform_3, window_bounds = array<i64: 1, 4, 256>}]} {
    %0 = tpu.iota {dimensions = array<i32: 1>} : vector<1x256xi32>
    %c16_i32 = arith.constant 16 : i32
    %1 = vector.broadcast %c16_i32 : i32 to vector<1x256xi32>
    %2 = arith.cmpi sge, %0, %1 : vector<1x256xi32>
    %c15_i32 = arith.constant 15 : i32
    %3 = vector.broadcast %c15_i32 : i32 to vector<1x256xi32>
    %4 = arith.andi %0, %3 : vector<1x256xi32>
    %c0_i32 = arith.constant 0 : i32
    %5 = vector.broadcast %c0_i32 : i32 to vector<1x256xi32>
    %6 = arith.cmpi ne, %4, %5 : vector<1x256xi32>
    %7 = arith.andi %2, %6 : vector<1x256xi1>
    %c16_i32_0 = arith.constant 16 : i32
    %8 = vector.broadcast %c16_i32_0 : i32 to vector<1x256xi32>
    %9 = arith.cmpi sge, %0, %8 : vector<1x256xi32>
    %c16_i32_1 = arith.constant 16 : i32
    %10 = vector.broadcast %c16_i32_1 : i32 to vector<1x256xi32>
    %11 = arith.cmpi sge, %0, %10 : vector<1x256xi32>
    %c15_i32_2 = arith.constant 15 : i32
    %12 = vector.broadcast %c15_i32_2 : i32 to vector<1x256xi32>
    %13 = arith.andi %0, %12 : vector<1x256xi32>
    %c15_i32_3 = arith.constant 15 : i32
    %14 = vector.broadcast %c15_i32_3 : i32 to vector<1x256xi32>
    %15 = arith.cmpi ne, %13, %14 : vector<1x256xi32>
    %16 = arith.andi %11, %15 : vector<1x256xi1>
    %c15_i32_4 = arith.constant 15 : i32
    %17 = vector.broadcast %c15_i32_4 : i32 to vector<1x256xi32>
    %18 = arith.andi %0, %17 : vector<1x256xi32>
    %c0_i32_5 = arith.constant 0 : i32
    %19 = vector.broadcast %c0_i32_5 : i32 to vector<1x256xi32>
    %20 = arith.cmpi ne, %18, %19 : vector<1x256xi32>
    %c15_i32_6 = arith.constant 15 : i32
    %21 = vector.broadcast %c15_i32_6 : i32 to vector<1x256xi32>
    %22 = arith.andi %0, %21 : vector<1x256xi32>
    %c15_i32_7 = arith.constant 15 : i32
    %23 = vector.broadcast %c15_i32_7 : i32 to vector<1x256xi32>
    %24 = arith.cmpi ne, %22, %23 : vector<1x256xi32>
    %c240_i32 = arith.constant 240 : i32
    %25 = vector.broadcast %c240_i32 : i32 to vector<1x256xi32>
    %26 = arith.cmpi slt, %0, %25 : vector<1x256xi32>
    %c15_i32_8 = arith.constant 15 : i32
    %27 = vector.broadcast %c15_i32_8 : i32 to vector<1x256xi32>
    %28 = arith.andi %0, %27 : vector<1x256xi32>
    %c0_i32_9 = arith.constant 0 : i32
    %29 = vector.broadcast %c0_i32_9 : i32 to vector<1x256xi32>
    %30 = arith.cmpi ne, %28, %29 : vector<1x256xi32>
    %31 = arith.andi %26, %30 : vector<1x256xi1>
    %c240_i32_10 = arith.constant 240 : i32
    %32 = vector.broadcast %c240_i32_10 : i32 to vector<1x256xi32>
    %33 = arith.cmpi slt, %0, %32 : vector<1x256xi32>
    %c240_i32_11 = arith.constant 240 : i32
    %34 = vector.broadcast %c240_i32_11 : i32 to vector<1x256xi32>
    %35 = arith.cmpi slt, %0, %34 : vector<1x256xi32>
    %c15_i32_12 = arith.constant 15 : i32
    %36 = vector.broadcast %c15_i32_12 : i32 to vector<1x256xi32>
    %37 = arith.andi %0, %36 : vector<1x256xi32>
    %c15_i32_13 = arith.constant 15 : i32
    %38 = vector.broadcast %c15_i32_13 : i32 to vector<1x256xi32>
    %39 = arith.cmpi ne, %37, %38 : vector<1x256xi32>
    %40 = arith.andi %35, %39 : vector<1x256xi1>
    %c0 = arith.constant 0 : index
    %c0_14 = arith.constant 0 : index
    %c0_15 = arith.constant 0 : index
    %41 = vector.load %arg1[%c0, %c0_14, %c0_15] : memref<1x4x256xf32, #tpu.memory_space<vmem>>, vector<1x4x256xf32>
    %42 = vector.shape_cast %41 : vector<1x4x256xf32> to vector<4x256xf32>
    %cst = arith.constant 0.000000e+00 : f32
    %43 = vector.broadcast %cst : f32 to vector<8x256xf32>
    %c17_i32 = arith.constant 17 : i32
    %44 = tpu.dynamic_rotate %42 by %c17_i32 dim 1 : vector<4x256xf32>, i32 -> vector<4x256xf32>
    %cst_16 = arith.constant 0.000000e+00 : f32
    %45 = vector.shape_cast %7 : vector<1x256xi1> to vector<1x256xi1>
    %46 = vector.broadcast %45 : vector<1x256xi1> to vector<4x256xi1>
    %47 = vector.broadcast %cst_16 : f32 to vector<4x256xf32>
    %48 = arith.select %46, %44, %47 : vector<4x256xi1>, vector<4x256xf32>
    %c0_17 = arith.constant 0 : index
    %c0_18 = arith.constant 0 : index
    %c0_19 = arith.constant 0 : index
    %49 = vector.load %arg2[%c0_17, %c0_18, %c0_19] : memref<9x8x4xf32, #tpu.memory_space<vmem>>, vector<1x8x4xf32>
    %50 = vector.shape_cast %49 : vector<1x8x4xf32> to vector<8x4xf32>
    %cst_20 = arith.constant dense<0.000000e+00> : vector<8x256xf32>
    %51 = tpu.matmul %50, %48, %cst_20 {dimension_numbers = #tpu.dot_dimension_numbers<[1], [0], [0], [1], [0, 0, 1, 1], [], []>} : vector<8x4xf32>, vector<4x256xf32>, vector<8x256xf32> -> vector<8x256xf32>
    %52 = arith.addf %43, %51 : vector<8x256xf32>
    %c16_i32_21 = arith.constant 16 : i32
    %53 = tpu.dynamic_rotate %42 by %c16_i32_21 dim 1 : vector<4x256xf32>, i32 -> vector<4x256xf32>
    %cst_22 = arith.constant 0.000000e+00 : f32
    %54 = vector.shape_cast %9 : vector<1x256xi1> to vector<1x256xi1>
    %55 = vector.broadcast %54 : vector<1x256xi1> to vector<4x256xi1>
    %56 = vector.broadcast %cst_22 : f32 to vector<4x256xf32>
    %57 = arith.select %55, %53, %56 : vector<4x256xi1>, vector<4x256xf32>
    %c1 = arith.constant 1 : index
    %c0_23 = arith.constant 0 : index
    %c0_24 = arith.constant 0 : index
    %58 = vector.load %arg2[%c1, %c0_23, %c0_24] : memref<9x8x4xf32, #tpu.memory_space<vmem>>, vector<1x8x4xf32>
    %59 = vector.shape_cast %58 : vector<1x8x4xf32> to vector<8x4xf32>
    %cst_25 = arith.constant dense<0.000000e+00> : vector<8x256xf32>
    %60 = tpu.matmul %59, %57, %cst_25 {dimension_numbers = #tpu.dot_dimension_numbers<[1], [0], [0], [1], [0, 0, 1, 1], [], []>} : vector<8x4xf32>, vector<4x256xf32>, vector<8x256xf32> -> vector<8x256xf32>
    %61 = arith.addf %52, %60 : vector<8x256xf32>
    %c15_i32_26 = arith.constant 15 : i32
    %62 = tpu.dynamic_rotate %42 by %c15_i32_26 dim 1 : vector<4x256xf32>, i32 -> vector<4x256xf32>
    %cst_27 = arith.constant 0.000000e+00 : f32
    %63 = vector.shape_cast %16 : vector<1x256xi1> to vector<1x256xi1>
    %64 = vector.broadcast %63 : vector<1x256xi1> to vector<4x256xi1>
    %65 = vector.broadcast %cst_27 : f32 to vector<4x256xf32>
    %66 = arith.select %64, %62, %65 : vector<4x256xi1>, vector<4x256xf32>
    %c2 = arith.constant 2 : index
    %c0_28 = arith.constant 0 : index
    %c0_29 = arith.constant 0 : index
    %67 = vector.load %arg2[%c2, %c0_28, %c0_29] : memref<9x8x4xf32, #tpu.memory_space<vmem>>, vector<1x8x4xf32>
    %68 = vector.shape_cast %67 : vector<1x8x4xf32> to vector<8x4xf32>
    %cst_30 = arith.constant dense<0.000000e+00> : vector<8x256xf32>
    %69 = tpu.matmul %68, %66, %cst_30 {dimension_numbers = #tpu.dot_dimension_numbers<[1], [0], [0], [1], [0, 0, 1, 1], [], []>} : vector<8x4xf32>, vector<4x256xf32>, vector<8x256xf32> -> vector<8x256xf32>
    %70 = arith.addf %61, %69 : vector<8x256xf32>
    %c1_i32 = arith.constant 1 : i32
    %71 = tpu.dynamic_rotate %42 by %c1_i32 dim 1 : vector<4x256xf32>, i32 -> vector<4x256xf32>
    %cst_31 = arith.constant 0.000000e+00 : f32
    %72 = vector.shape_cast %20 : vector<1x256xi1> to vector<1x256xi1>
    %73 = vector.broadcast %72 : vector<1x256xi1> to vector<4x256xi1>
    %74 = vector.broadcast %cst_31 : f32 to vector<4x256xf32>
    %75 = arith.select %73, %71, %74 : vector<4x256xi1>, vector<4x256xf32>
    %c3 = arith.constant 3 : index
    %c0_32 = arith.constant 0 : index
    %c0_33 = arith.constant 0 : index
    %76 = vector.load %arg2[%c3, %c0_32, %c0_33] : memref<9x8x4xf32, #tpu.memory_space<vmem>>, vector<1x8x4xf32>
    %77 = vector.shape_cast %76 : vector<1x8x4xf32> to vector<8x4xf32>
    %cst_34 = arith.constant dense<0.000000e+00> : vector<8x256xf32>
    %78 = tpu.matmul %77, %75, %cst_34 {dimension_numbers = #tpu.dot_dimension_numbers<[1], [0], [0], [1], [0, 0, 1, 1], [], []>} : vector<8x4xf32>, vector<4x256xf32>, vector<8x256xf32> -> vector<8x256xf32>
    %79 = arith.addf %70, %78 : vector<8x256xf32>
    %c4 = arith.constant 4 : index
    %c0_35 = arith.constant 0 : index
    %c0_36 = arith.constant 0 : index
    %80 = vector.load %arg2[%c4, %c0_35, %c0_36] : memref<9x8x4xf32, #tpu.memory_space<vmem>>, vector<1x8x4xf32>
    %81 = vector.shape_cast %80 : vector<1x8x4xf32> to vector<8x4xf32>
    %cst_37 = arith.constant dense<0.000000e+00> : vector<8x256xf32>
    %82 = tpu.matmul %81, %42, %cst_37 {dimension_numbers = #tpu.dot_dimension_numbers<[1], [0], [0], [1], [0, 0, 1, 1], [], []>} : vector<8x4xf32>, vector<4x256xf32>, vector<8x256xf32> -> vector<8x256xf32>
    %83 = arith.addf %79, %82 : vector<8x256xf32>
    %c255_i32 = arith.constant 255 : i32
    %84 = tpu.dynamic_rotate %42 by %c255_i32 dim 1 : vector<4x256xf32>, i32 -> vector<4x256xf32>
    %cst_38 = arith.constant 0.000000e+00 : f32
    %85 = vector.shape_cast %24 : vector<1x256xi1> to vector<1x256xi1>
    %86 = vector.broadcast %85 : vector<1x256xi1> to vector<4x256xi1>
    %87 = vector.broadcast %cst_38 : f32 to vector<4x256xf32>
    %88 = arith.select %86, %84, %87 : vector<4x256xi1>, vector<4x256xf32>
    %c5 = arith.constant 5 : index
    %c0_39 = arith.constant 0 : index
    %c0_40 = arith.constant 0 : index
    %89 = vector.load %arg2[%c5, %c0_39, %c0_40] : memref<9x8x4xf32, #tpu.memory_space<vmem>>, vector<1x8x4xf32>
    %90 = vector.shape_cast %89 : vector<1x8x4xf32> to vector<8x4xf32>
    %cst_41 = arith.constant dense<0.000000e+00> : vector<8x256xf32>
    %91 = tpu.matmul %90, %88, %cst_41 {dimension_numbers = #tpu.dot_dimension_numbers<[1], [0], [0], [1], [0, 0, 1, 1], [], []>} : vector<8x4xf32>, vector<4x256xf32>, vector<8x256xf32> -> vector<8x256xf32>
    %92 = arith.addf %83, %91 : vector<8x256xf32>
    %c241_i32 = arith.constant 241 : i32
    %93 = tpu.dynamic_rotate %42 by %c241_i32 dim 1 : vector<4x256xf32>, i32 -> vector<4x256xf32>
    %cst_42 = arith.constant 0.000000e+00 : f32
    %94 = vector.shape_cast %31 : vector<1x256xi1> to vector<1x256xi1>
    %95 = vector.broadcast %94 : vector<1x256xi1> to vector<4x256xi1>
    %96 = vector.broadcast %cst_42 : f32 to vector<4x256xf32>
    %97 = arith.select %95, %93, %96 : vector<4x256xi1>, vector<4x256xf32>
    %c6 = arith.constant 6 : index
    %c0_43 = arith.constant 0 : index
    %c0_44 = arith.constant 0 : index
    %98 = vector.load %arg2[%c6, %c0_43, %c0_44] : memref<9x8x4xf32, #tpu.memory_space<vmem>>, vector<1x8x4xf32>
    %99 = vector.shape_cast %98 : vector<1x8x4xf32> to vector<8x4xf32>
    %cst_45 = arith.constant dense<0.000000e+00> : vector<8x256xf32>
    %100 = tpu.matmul %99, %97, %cst_45 {dimension_numbers = #tpu.dot_dimension_numbers<[1], [0], [0], [1], [0, 0, 1, 1], [], []>} : vector<8x4xf32>, vector<4x256xf32>, vector<8x256xf32> -> vector<8x256xf32>
    %101 = arith.addf %92, %100 : vector<8x256xf32>
    %c240_i32_46 = arith.constant 240 : i32
    %102 = tpu.dynamic_rotate %42 by %c240_i32_46 dim 1 : vector<4x256xf32>, i32 -> vector<4x256xf32>
    %cst_47 = arith.constant 0.000000e+00 : f32
    %103 = vector.shape_cast %33 : vector<1x256xi1> to vector<1x256xi1>
    %104 = vector.broadcast %103 : vector<1x256xi1> to vector<4x256xi1>
    %105 = vector.broadcast %cst_47 : f32 to vector<4x256xf32>
    %106 = arith.select %104, %102, %105 : vector<4x256xi1>, vector<4x256xf32>
    %c7 = arith.constant 7 : index
    %c0_48 = arith.constant 0 : index
    %c0_49 = arith.constant 0 : index
    %107 = vector.load %arg2[%c7, %c0_48, %c0_49] : memref<9x8x4xf32, #tpu.memory_space<vmem>>, vector<1x8x4xf32>
    %108 = vector.shape_cast %107 : vector<1x8x4xf32> to vector<8x4xf32>
    %cst_50 = arith.constant dense<0.000000e+00> : vector<8x256xf32>
    %109 = tpu.matmul %108, %106, %cst_50 {dimension_numbers = #tpu.dot_dimension_numbers<[1], [0], [0], [1], [0, 0, 1, 1], [], []>} : vector<8x4xf32>, vector<4x256xf32>, vector<8x256xf32> -> vector<8x256xf32>
    %110 = arith.addf %101, %109 : vector<8x256xf32>
    %c239_i32 = arith.constant 239 : i32
    %111 = tpu.dynamic_rotate %42 by %c239_i32 dim 1 : vector<4x256xf32>, i32 -> vector<4x256xf32>
    %cst_51 = arith.constant 0.000000e+00 : f32
    %112 = vector.shape_cast %40 : vector<1x256xi1> to vector<1x256xi1>
    %113 = vector.broadcast %112 : vector<1x256xi1> to vector<4x256xi1>
    %114 = vector.broadcast %cst_51 : f32 to vector<4x256xf32>
    %115 = arith.select %113, %111, %114 : vector<4x256xi1>, vector<4x256xf32>
    %c8 = arith.constant 8 : index
    %c0_52 = arith.constant 0 : index
    %c0_53 = arith.constant 0 : index
    %116 = vector.load %arg2[%c8, %c0_52, %c0_53] : memref<9x8x4xf32, #tpu.memory_space<vmem>>, vector<1x8x4xf32>
    %117 = vector.shape_cast %116 : vector<1x8x4xf32> to vector<8x4xf32>
    %cst_54 = arith.constant dense<0.000000e+00> : vector<8x256xf32>
    %118 = tpu.matmul %117, %115, %cst_54 {dimension_numbers = #tpu.dot_dimension_numbers<[1], [0], [0], [1], [0, 0, 1, 1], [], []>} : vector<8x4xf32>, vector<4x256xf32>, vector<8x256xf32> -> vector<8x256xf32>
    %119 = arith.addf %110, %118 : vector<8x256xf32>
    %cst_55 = arith.constant 0.000000e+00 : f32
    %120 = vector.broadcast %cst_55 : f32 to vector<8x256xf32>
    %121 = arith.maximumf %119, %120 : vector<8x256xf32>
    %cst_56 = arith.constant 0.000000e+00 : f32
    %122 = vector.broadcast %cst_56 : f32 to vector<4x256xf32>
    %c17_i32_57 = arith.constant 17 : i32
    %123 = tpu.dynamic_rotate %121 by %c17_i32_57 dim 1 : vector<8x256xf32>, i32 -> vector<8x256xf32>
    %cst_58 = arith.constant 0.000000e+00 : f32
    %124 = vector.shape_cast %7 : vector<1x256xi1> to vector<1x256xi1>
    %125 = vector.broadcast %124 : vector<1x256xi1> to vector<8x256xi1>
    %126 = vector.broadcast %cst_58 : f32 to vector<8x256xf32>
    %127 = arith.select %125, %123, %126 : vector<8x256xi1>, vector<8x256xf32>
    %c0_59 = arith.constant 0 : index
    %c0_60 = arith.constant 0 : index
    %c0_61 = arith.constant 0 : index
    %128 = vector.load %arg3[%c0_59, %c0_60, %c0_61] : memref<9x4x8xf32, #tpu.memory_space<vmem>>, vector<1x4x8xf32>
    %129 = vector.shape_cast %128 : vector<1x4x8xf32> to vector<4x8xf32>
    %cst_62 = arith.constant dense<0.000000e+00> : vector<4x256xf32>
    %130 = tpu.matmul %129, %127, %cst_62 {dimension_numbers = #tpu.dot_dimension_numbers<[1], [0], [0], [1], [0, 0, 1, 1], [], []>} : vector<4x8xf32>, vector<8x256xf32>, vector<4x256xf32> -> vector<4x256xf32>
    %131 = arith.addf %122, %130 : vector<4x256xf32>
    %c16_i32_63 = arith.constant 16 : i32
    %132 = tpu.dynamic_rotate %121 by %c16_i32_63 dim 1 : vector<8x256xf32>, i32 -> vector<8x256xf32>
    %cst_64 = arith.constant 0.000000e+00 : f32
    %133 = vector.shape_cast %9 : vector<1x256xi1> to vector<1x256xi1>
    %134 = vector.broadcast %133 : vector<1x256xi1> to vector<8x256xi1>
    %135 = vector.broadcast %cst_64 : f32 to vector<8x256xf32>
    %136 = arith.select %134, %132, %135 : vector<8x256xi1>, vector<8x256xf32>
    %c1_65 = arith.constant 1 : index
    %c0_66 = arith.constant 0 : index
    %c0_67 = arith.constant 0 : index
    %137 = vector.load %arg3[%c1_65, %c0_66, %c0_67] : memref<9x4x8xf32, #tpu.memory_space<vmem>>, vector<1x4x8xf32>
    %138 = vector.shape_cast %137 : vector<1x4x8xf32> to vector<4x8xf32>
    %cst_68 = arith.constant dense<0.000000e+00> : vector<4x256xf32>
    %139 = tpu.matmul %138, %136, %cst_68 {dimension_numbers = #tpu.dot_dimension_numbers<[1], [0], [0], [1], [0, 0, 1, 1], [], []>} : vector<4x8xf32>, vector<8x256xf32>, vector<4x256xf32> -> vector<4x256xf32>
    %140 = arith.addf %131, %139 : vector<4x256xf32>
    %c15_i32_69 = arith.constant 15 : i32
    %141 = tpu.dynamic_rotate %121 by %c15_i32_69 dim 1 : vector<8x256xf32>, i32 -> vector<8x256xf32>
    %cst_70 = arith.constant 0.000000e+00 : f32
    %142 = vector.shape_cast %16 : vector<1x256xi1> to vector<1x256xi1>
    %143 = vector.broadcast %142 : vector<1x256xi1> to vector<8x256xi1>
    %144 = vector.broadcast %cst_70 : f32 to vector<8x256xf32>
    %145 = arith.select %143, %141, %144 : vector<8x256xi1>, vector<8x256xf32>
    %c2_71 = arith.constant 2 : index
    %c0_72 = arith.constant 0 : index
    %c0_73 = arith.constant 0 : index
    %146 = vector.load %arg3[%c2_71, %c0_72, %c0_73] : memref<9x4x8xf32, #tpu.memory_space<vmem>>, vector<1x4x8xf32>
    %147 = vector.shape_cast %146 : vector<1x4x8xf32> to vector<4x8xf32>
    %cst_74 = arith.constant dense<0.000000e+00> : vector<4x256xf32>
    %148 = tpu.matmul %147, %145, %cst_74 {dimension_numbers = #tpu.dot_dimension_numbers<[1], [0], [0], [1], [0, 0, 1, 1], [], []>} : vector<4x8xf32>, vector<8x256xf32>, vector<4x256xf32> -> vector<4x256xf32>
    %149 = arith.addf %140, %148 : vector<4x256xf32>
    %c1_i32_75 = arith.constant 1 : i32
    %150 = tpu.dynamic_rotate %121 by %c1_i32_75 dim 1 : vector<8x256xf32>, i32 -> vector<8x256xf32>
    %cst_76 = arith.constant 0.000000e+00 : f32
    %151 = vector.shape_cast %20 : vector<1x256xi1> to vector<1x256xi1>
    %152 = vector.broadcast %151 : vector<1x256xi1> to vector<8x256xi1>
    %153 = vector.broadcast %cst_76 : f32 to vector<8x256xf32>
    %154 = arith.select %152, %150, %153 : vector<8x256xi1>, vector<8x256xf32>
    %c3_77 = arith.constant 3 : index
    %c0_78 = arith.constant 0 : index
    %c0_79 = arith.constant 0 : index
    %155 = vector.load %arg3[%c3_77, %c0_78, %c0_79] : memref<9x4x8xf32, #tpu.memory_space<vmem>>, vector<1x4x8xf32>
    %156 = vector.shape_cast %155 : vector<1x4x8xf32> to vector<4x8xf32>
    %cst_80 = arith.constant dense<0.000000e+00> : vector<4x256xf32>
    %157 = tpu.matmul %156, %154, %cst_80 {dimension_numbers = #tpu.dot_dimension_numbers<[1], [0], [0], [1], [0, 0, 1, 1], [], []>} : vector<4x8xf32>, vector<8x256xf32>, vector<4x256xf32> -> vector<4x256xf32>
    %158 = arith.addf %149, %157 : vector<4x256xf32>
    %c4_81 = arith.constant 4 : index
    %c0_82 = arith.constant 0 : index
    %c0_83 = arith.constant 0 : index
    %159 = vector.load %arg3[%c4_81, %c0_82, %c0_83] : memref<9x4x8xf32, #tpu.memory_space<vmem>>, vector<1x4x8xf32>
    %160 = vector.shape_cast %159 : vector<1x4x8xf32> to vector<4x8xf32>
    %cst_84 = arith.constant dense<0.000000e+00> : vector<4x256xf32>
    %161 = tpu.matmul %160, %121, %cst_84 {dimension_numbers = #tpu.dot_dimension_numbers<[1], [0], [0], [1], [0, 0, 1, 1], [], []>} : vector<4x8xf32>, vector<8x256xf32>, vector<4x256xf32> -> vector<4x256xf32>
    %162 = arith.addf %158, %161 : vector<4x256xf32>
    %c255_i32_85 = arith.constant 255 : i32
    %163 = tpu.dynamic_rotate %121 by %c255_i32_85 dim 1 : vector<8x256xf32>, i32 -> vector<8x256xf32>
    %cst_86 = arith.constant 0.000000e+00 : f32
    %164 = vector.shape_cast %24 : vector<1x256xi1> to vector<1x256xi1>
    %165 = vector.broadcast %164 : vector<1x256xi1> to vector<8x256xi1>
    %166 = vector.broadcast %cst_86 : f32 to vector<8x256xf32>
    %167 = arith.select %165, %163, %166 : vector<8x256xi1>, vector<8x256xf32>
    %c5_87 = arith.constant 5 : index
    %c0_88 = arith.constant 0 : index
    %c0_89 = arith.constant 0 : index
    %168 = vector.load %arg3[%c5_87, %c0_88, %c0_89] : memref<9x4x8xf32, #tpu.memory_space<vmem>>, vector<1x4x8xf32>
    %169 = vector.shape_cast %168 : vector<1x4x8xf32> to vector<4x8xf32>
    %cst_90 = arith.constant dense<0.000000e+00> : vector<4x256xf32>
    %170 = tpu.matmul %169, %167, %cst_90 {dimension_numbers = #tpu.dot_dimension_numbers<[1], [0], [0], [1], [0, 0, 1, 1], [], []>} : vector<4x8xf32>, vector<8x256xf32>, vector<4x256xf32> -> vector<4x256xf32>
    %171 = arith.addf %162, %170 : vector<4x256xf32>
    %c241_i32_91 = arith.constant 241 : i32
    %172 = tpu.dynamic_rotate %121 by %c241_i32_91 dim 1 : vector<8x256xf32>, i32 -> vector<8x256xf32>
    %cst_92 = arith.constant 0.000000e+00 : f32
    %173 = vector.shape_cast %31 : vector<1x256xi1> to vector<1x256xi1>
    %174 = vector.broadcast %173 : vector<1x256xi1> to vector<8x256xi1>
    %175 = vector.broadcast %cst_92 : f32 to vector<8x256xf32>
    %176 = arith.select %174, %172, %175 : vector<8x256xi1>, vector<8x256xf32>
    %c6_93 = arith.constant 6 : index
    %c0_94 = arith.constant 0 : index
    %c0_95 = arith.constant 0 : index
    %177 = vector.load %arg3[%c6_93, %c0_94, %c0_95] : memref<9x4x8xf32, #tpu.memory_space<vmem>>, vector<1x4x8xf32>
    %178 = vector.shape_cast %177 : vector<1x4x8xf32> to vector<4x8xf32>
    %cst_96 = arith.constant dense<0.000000e+00> : vector<4x256xf32>
    %179 = tpu.matmul %178, %176, %cst_96 {dimension_numbers = #tpu.dot_dimension_numbers<[1], [0], [0], [1], [0, 0, 1, 1], [], []>} : vector<4x8xf32>, vector<8x256xf32>, vector<4x256xf32> -> vector<4x256xf32>
    %180 = arith.addf %171, %179 : vector<4x256xf32>
    %c240_i32_97 = arith.constant 240 : i32
    %181 = tpu.dynamic_rotate %121 by %c240_i32_97 dim 1 : vector<8x256xf32>, i32 -> vector<8x256xf32>
    %cst_98 = arith.constant 0.000000e+00 : f32
    %182 = vector.shape_cast %33 : vector<1x256xi1> to vector<1x256xi1>
    %183 = vector.broadcast %182 : vector<1x256xi1> to vector<8x256xi1>
    %184 = vector.broadcast %cst_98 : f32 to vector<8x256xf32>
    %185 = arith.select %183, %181, %184 : vector<8x256xi1>, vector<8x256xf32>
    %c7_99 = arith.constant 7 : index
    %c0_100 = arith.constant 0 : index
    %c0_101 = arith.constant 0 : index
    %186 = vector.load %arg3[%c7_99, %c0_100, %c0_101] : memref<9x4x8xf32, #tpu.memory_space<vmem>>, vector<1x4x8xf32>
    %187 = vector.shape_cast %186 : vector<1x4x8xf32> to vector<4x8xf32>
    %cst_102 = arith.constant dense<0.000000e+00> : vector<4x256xf32>
    %188 = tpu.matmul %187, %185, %cst_102 {dimension_numbers = #tpu.dot_dimension_numbers<[1], [0], [0], [1], [0, 0, 1, 1], [], []>} : vector<4x8xf32>, vector<8x256xf32>, vector<4x256xf32> -> vector<4x256xf32>
    %189 = arith.addf %180, %188 : vector<4x256xf32>
    %c239_i32_103 = arith.constant 239 : i32
    %190 = tpu.dynamic_rotate %121 by %c239_i32_103 dim 1 : vector<8x256xf32>, i32 -> vector<8x256xf32>
    %cst_104 = arith.constant 0.000000e+00 : f32
    %191 = vector.shape_cast %40 : vector<1x256xi1> to vector<1x256xi1>
    %192 = vector.broadcast %191 : vector<1x256xi1> to vector<8x256xi1>
    %193 = vector.broadcast %cst_104 : f32 to vector<8x256xf32>
    %194 = arith.select %192, %190, %193 : vector<8x256xi1>, vector<8x256xf32>
    %c8_105 = arith.constant 8 : index
    %c0_106 = arith.constant 0 : index
    %c0_107 = arith.constant 0 : index
    %195 = vector.load %arg3[%c8_105, %c0_106, %c0_107] : memref<9x4x8xf32, #tpu.memory_space<vmem>>, vector<1x4x8xf32>
    %196 = vector.shape_cast %195 : vector<1x4x8xf32> to vector<4x8xf32>
    %cst_108 = arith.constant dense<0.000000e+00> : vector<4x256xf32>
    %197 = tpu.matmul %196, %194, %cst_108 {dimension_numbers = #tpu.dot_dimension_numbers<[1], [0], [0], [1], [0, 0, 1, 1], [], []>} : vector<4x8xf32>, vector<8x256xf32>, vector<4x256xf32> -> vector<4x256xf32>
    %198 = arith.addf %189, %197 : vector<4x256xf32>
    %cst_109 = arith.constant 0.000000e+00 : f32
    %199 = vector.broadcast %cst_109 : f32 to vector<4x256xf32>
    %200 = arith.maximumf %198, %199 : vector<4x256xf32>
    %c0_110 = arith.constant 0 : index
    %c0_111 = arith.constant 0 : index
    %c0_112 = arith.constant 0 : index
    %201 = vector.load %arg4[%c0_110, %c0_111, %c0_112] : memref<1x4x256xf32, #tpu.memory_space<vmem>>, vector<1x4x256xf32>
    %202 = vector.shape_cast %201 : vector<1x4x256xf32> to vector<4x256xf32>
    %203 = vector.shape_cast %200 : vector<4x256xf32> to vector<1x4x256xf32>
    tpu.vector_store %arg4[%c0_110, %c0_111, %c0_112], %203 {strides = array<i32>} : memref<1x4x256xf32, #tpu.memory_space<vmem>>, vector<1x4x256xf32>,
    return
  }
  func.func @transform_0(%arg0: i32) -> (i32, i32, i32) {
    %c0_i32 = arith.constant 0 : i32
    %c0_i32_0 = arith.constant 0 : i32
    %c0_i32_1 = arith.constant 0 : i32
    return %arg0, %c0_i32, %c0_i32_0 : i32, i32, i32
  }
  func.func @transform_1(%arg0: i32) -> (i32, i32, i32) {
    %c0_i32 = arith.constant 0 : i32
    %c0_i32_0 = arith.constant 0 : i32
    %c0_i32_1 = arith.constant 0 : i32
    %c0_i32_2 = arith.constant 0 : i32
    return %c0_i32, %c0_i32_0, %c0_i32_1 : i32, i32, i32
  }
  func.func @transform_2(%arg0: i32) -> (i32, i32, i32) {
    %c0_i32 = arith.constant 0 : i32
    %c0_i32_0 = arith.constant 0 : i32
    %c0_i32_1 = arith.constant 0 : i32
    %c0_i32_2 = arith.constant 0 : i32
    return %c0_i32, %c0_i32_0, %c0_i32_1 : i32, i32, i32
  }
  func.func @transform_3(%arg0: i32) -> (i32, i32, i32) {
    %c0_i32 = arith.constant 0 : i32
    %c0_i32_0 = arith.constant 0 : i32
    %c0_i32_1 = arith.constant 0 : i32
    return %arg0, %c0_i32, %c0_i32_0 : i32, i32, i32
  }
}

</mosaic_0001>

<llo_original>
// kernel: fpn_head_forward.1
$region0: #{fpn_head_forward.1}
  #allocation0 [shape = 'u32[]', space=smem, size = 0x4, offset = 0x4, fixed_abs, tag = 'smem constant byte address 0x4 - core index']
  #allocation1 [shape = 'u32[72,128]{1,0:T(1,128)}', space=vmem, size = 0x9000, scoped, tag = 'internal scratch']
  %s0 = inlined_call_operand.vmem [shape: f32[2,4,256], index: 0, kind: input, shape index: {}]
  %s1 = inlined_call_operand.vmem [shape: f32[9,8,4], index: 1, kind: input, shape index: {}]
  %s2 = inlined_call_operand.vmem [shape: f32[9,4,8], index: 2, kind: input, shape index: {}]
  %s3 = inlined_call_operand.vmem [shape: f32[2,4,256], index: 3, kind: output, shape index: {}]
  %s4 = sld [smem:[#allocation0]]
  $region45: #{fpn_head_forward.1} parent=0
    _
  %s6 = ssub.s32 1, %s4
  %s7 = scalar_select 0, %s6, %s4
  loop: start=0, step=1, limit=4
  $region2: #{fpn_head_forward.1} parent=0 // loop_pre_header
    _
  $region3: #{fpn_head_forward.1} parent=0 // loop_header
    %s9 = sphi 0, %s13
    %p10 = scmp.ge.s32.totalorder %s9, 4
    %s19 = sphi 0, %s21
    %s22 = sphi 0, %s19
    %s23 = sphi 0, %s22
    %s39 = sphi 0, %s23
    %s43 = sphi 0, %s43
    %s45 = sphi 0, %s43
    %s46 = sphi 0, %s45
    %s60 = sphi 0, %s46
    %s64 = sphi 0, %s64
    %s66 = sphi 0, %s64
    %s67 = sphi 0, %s66
    %s81 = sphi 0, %s67
    %s87 = sphi 0, %s89
    %s90 = sphi 0, %s87
    %s91 = sphi 0, %s90
    %s107 = sphi 0, %s91
  $region4: #{fpn_head_forward.1} parent=0 // loop_header_branch
    %12 = sbr.rel (%p10) target = $region8
  $region5: #{fpn_head_forward.1} parent=0 // loop_body
    %s14 = ssub.s32 %s9, 1
    %s15 = ssub.s32 %s9, 2
    %s16 = sadd.s32 %s9, 1
    %s17 = ssub.s32 %s9, %s16
    %p18 = scmp.eq.s32.totalorder %s17, 0
    %s20 = sadd.s32 %s19, 1
    %s21 = scalar_select %p18, %s19, %s20
    %p24 = pneg %p18
    %p25 = scmp.eq.s32.totalorder %s9, 1
    %p26 = por %p24, %p25
    %p27 = scmp.ne.s32.totalorder %s19, %s22
    %p28 = scmp.eq.s32.totalorder %s9, 0
    %p29 = por %p27, %p28
    %p30 = scmp.ne.s32.totalorder %s19, %s22
    %p31 = scmp.eq.s32.totalorder %s14, 1
    %p32 = por %p30, %p31
    %p33 = scmp.ne.s32.totalorder %s22, %s23
    %p34 = scmp.eq.s32.totalorder %s14, 0
    %p35 = por %p33, %p34
    %p36 = scmp.ne.s32.totalorder %s22, %s23
    %p37 = scmp.eq.s32.totalorder %s15, 1
    %p38 = por %p36, %p37
    %p40 = scmp.ne.s32.totalorder %s23, %s39
    %p41 = scmp.eq.s32.totalorder %s15, 0
    %p42 = por %p40, %p41
    %s44 = sadd.s32 %s43, 1
    %p47 = scmp.eq.s32.totalorder %s9, 1
    %p48 = scmp.ne.s32.totalorder %s43, %s45
    %p49 = scmp.eq.s32.totalorder %s9, 0
    %p50 = por %p48, %p49
    %p51 = scmp.ne.s32.totalorder %s43, %s45
    %p52 = scmp.eq.s32.totalorder %s14, 1
    %p53 = por %p51, %p52
    %p54 = scmp.ne.s32.totalorder %s45, %s46
    %p55 = scmp.eq.s32.totalorder %s14, 0
    %p56 = por %p54, %p55
    %p57 = scmp.ne.s32.totalorder %s45, %s46
    %p58 = scmp.eq.s32.totalorder %s15, 1
    %p59 = por %p57, %p58
    %p61 = scmp.ne.s32.totalorder %s46, %s60
    %p62 = scmp.eq.s32.totalorder %s15, 0
    %p63 = por %p61, %p62
    %s65 = sadd.s32 %s64, 1
    %p68 = scmp.eq.s32.totalorder %s9, 1
    %p69 = scmp.ne.s32.totalorder %s64, %s66
    %p70 = scmp.eq.s32.totalorder %s9, 0
    %p71 = por %p69, %p70
    %p72 = scmp.ne.s32.totalorder %s64, %s66
    %p73 = scmp.eq.s32.totalorder %s14, 1
    %p74 = por %p72, %p73
    %p75 = scmp.ne.s32.totalorder %s66, %s67
    %p76 = scmp.eq.s32.totalorder %s14, 0
    %p77 = por %p75, %p76
    %p78 = scmp.ne.s32.totalorder %s66, %s67
    %p79 = scmp.eq.s32.totalorder %s15, 1
    %p80 = por %p78, %p79
    %p82 = scmp.ne.s32.totalorder %s67, %s81
    %p83 = scmp.eq.s32.totalorder %s15, 0
    %p84 = por %p82, %p83
    %s85 = ssub.s32 %s9, %s16
    %p86 = scmp.eq.s32.totalorder %s85, 0
    %s88 = sadd.s32 %s87, 1
    %s89 = scalar_select %p86, %s87, %s88
    %p92 = pneg %p86
    %p93 = scmp.eq.s32.totalorder %s9, 1
    %p94 = por %p92, %p93
    %p95 = scmp.ne.s32.totalorder %s87, %s90
    %p96 = scmp.eq.s32.totalorder %s9, 0
    %p97 = por %p95, %p96
    %p98 = scmp.ne.s32.totalorder %s87, %s90
    %p99 = scmp.eq.s32.totalorder %s14, 1
    %p100 = por %p98, %p99
    %p101 = scmp.ne.s32.totalorder %s90, %s91
    %p102 = scmp.eq.s32.totalorder %s14, 0
    %p103 = por %p101, %p102
    %p104 = scmp.ne.s32.totalorder %s90, %s91
    %p105 = scmp.eq.s32.totalorder %s15, 1
    %p106 = por %p104, %p105
    %p108 = scmp.ne.s32.totalorder %s91, %s107
    %p109 = scmp.eq.s32.totalorder %s15, 0
    %p110 = por %p108, %p109
    %p111 = scmp.le.s32.totalorder 1, %s9
    %p112 = scmp.lt.s32.totalorder %s9, 3
    %p113 = pnand %p111, %p112
    %p114 = pneg %p113
    // Predicated region
    $region9: #{fpn_head_forward.1} parent=5 // pred_check
      _
    $region10: #{fpn_head_forward.1} parent=5 // pred_check_branch
      %116 = sbr.rel (%p113) target = $region12
    $region11: #{fpn_head_forward.1} parent=5 // pred_region
      %s117 = ssub.s32 %s9, 1
      // Predicated region
      $region13: #{fpn_head_forward.1} parent=11 // pred_check
        %p118 = pneg %p56
      $region14: #{fpn_head_forward.1} parent=11 // pred_check_branch
        %120 = sbr.rel (%p118) target = $region16
      $region15: #{fpn_head_forward.1} parent=11 // pred_region
        _
      $region16: #{fpn_head_forward.1} parent=11 // pred_fallthru
        _
      // Predicated region
      $region17: #{fpn_head_forward.1} parent=11 // pred_check
        %p121 = pneg %p77
      $region18: #{fpn_head_forward.1} parent=11 // pred_check_branch
        %123 = sbr.rel (%p121) target = $region20
      $region19: #{fpn_head_forward.1} parent=11 // pred_region
        _
      $region20: #{fpn_head_forward.1} parent=11 // pred_fallthru
        _
    $region12: #{fpn_head_forward.1} parent=5 // pred_fallthru
      _
    %p124 = scmp.lt.s32.totalorder %s9, 2
    // Predicated region
    $region21: #{fpn_head_forward.1} parent=5 // pred_check
      %p125 = pneg %p124
    $region22: #{fpn_head_forward.1} parent=5 // pred_check_branch
      %127 = sbr.rel (%p125) target = $region24
    $region23: #{fpn_head_forward.1} parent=5 // pred_region
      // Predicated region
      $region25: #{fpn_head_forward.1} parent=23 // pred_check
        %p128 = pneg %p29
      $region26: #{fpn_head_forward.1} parent=23 // pred_check_branch
        %130 = sbr.rel (%p128) target = $region28
      $region27: #{fpn_head_forward.1} parent=23 // pred_region
        %p131 = scmp.lt.s32.totalorder %s9, 1
        %s132 = scalar_select %p131, %s9, 1
        %s133 = smul.addr %s132, 2
        %s134 = smul.addr %s133, 4
        %s135 = scalar_lea.vmem %s0, %s134
      $region28: #{fpn_head_forward.1} parent=23 // pred_fallthru
        _
    $region24: #{fpn_head_forward.1} parent=5 // pred_fallthru
      _
    %p136 = scmp.le.s32.totalorder 1, %s9
    %p137 = scmp.lt.s32.totalorder %s9, 3
    %p138 = pnand %p136, %p137
    %p139 = pneg %p138
    // Predicated region
    $region29: #{fpn_head_forward.1} parent=5 // pred_check
      _
    $region30: #{fpn_head_forward.1} parent=5 // pred_check_branch
      %141 = sbr.rel (%p138) target = $region32
    $region31: #{fpn_head_forward.1} parent=5 // pred_region
      %s142 = ssub.s32 %s9, 1
      %p143 = scmp.lt.s32.totalorder %s14, 1
      %s144 = scalar_select %p143, %s14, 1
      %s145 = smul.addr %s144, 2
      %s146 = smul.addr %s145, 4
      %s147 = scalar_lea.vmem %s0, %s146
      %p148 = pneg %p35
      %p149 = pneg %p32
      %p150 = pneg %p56
      %p151 = pneg %p53
      %p152 = pneg %p77
      %p153 = pneg %p74
      %p154 = pneg %p103
      %p155 = pneg %p100
      %p156 = scmp.lt.s32.totalorder %s14, 1
      %s157 = scalar_select %p156, %s14, 1
      %s158 = smul.addr %s157, 2
      %s159 = smul.addr %s158, 4
      %s160 = scalar_lea.vmem %s3, %s159
      %p161 = scmp.lt.s32.totalorder %s14, 1
      %s162 = scalar_select %p161, %s14, 1
      %s163 = smul.addr %s162, 2
      %s164 = smul.addr %s163, 4
      %s165 = scalar_lea.vmem %s0, %s164
      %p166 = scmp.lt.s32.totalorder %s14, 1
      %s167 = scalar_select %p166, %s14, 1
      %s168 = smul.addr %s167, 2
      %s169 = smul.addr %s168, 4
      %s170 = scalar_lea.vmem %s3, %s169
      %v171 = vlaneseq
      %v172 = vand.u32 %v171, 127
      %v173 = vadd.s32 %v172, 128
      %vm174 = vcmp.ge.s32.totalorder %v172, 16
      %vm175 = vcmp.ge.s32.totalorder %v173, 16
      %v176 = vand.u32 %v172, 15
      %v177 = vand.u32 %v173, 15
      %vm178 = vcmp.ne.s32.totalorder %v176, 0
      %vm179 = vcmp.ne.s32.totalorder %v177, 0
      %vm180 = vmand %vm174, %vm178
      %vm181 = vmand %vm175, %vm179
      %vm182 = vcmp.ne.s32.totalorder %v176, 15
      %vm183 = vcmp.ne.s32.totalorder %v177, 15
      %vm184 = vmand %vm174, %vm182
      %vm185 = vmand %vm175, %vm183
      %vm186 = vcmp.lt.s32.totalorder %v172, 240
      %vm187 = vcmp.lt.s32.totalorder %v173, 240
      %vm188 = vmand %vm186, %vm178
      %vm189 = vmand %vm187, %vm179
      %vm190 = vmand %vm186, %vm182
      %vm191 = vmand %vm187, %vm183
      %v192 = vld [vmem:[%s165] sm:$0xff]
      %194 = vst [vmem:[#allocation1] ss:$2 sm:$0xff] %v192
      %v195 = vld.sshfl [vmem:[#allocation1] sm:$0xff pattern:$0x75316420]
      %v196 = vld.sshfl [vmem:[#allocation1 + $0x8] sm:$0xff pattern:$0x75316420]
      %199 = vrot.lane.b32.xlu0 %v195, 17
      %v200 = vpop.permute.xlu0 %199
      %201 = vrot.lane.b32.xlu0 %v196, 17
      %v202 = vpop.permute.xlu0 %201
      %vm203 = vcmp.lt.s32.totalorder %v172, 17
      %v204 = vsel %vm203, %v200, %v202
      %v205 = vsel %vm203, %v202, %v200
      %v206 = vsel %vm180, 1, 0
      %v207 = vsel %vm181, 1, 0
      %vm208 = vcmp.eq.s32.totalorder %v206, 1
      %vm209 = vcmp.eq.s32.totalorder %v207, 1
      %v210 = vsel %vm208, %v205, 0.0
      %v211 = vsel %vm209, %v204, 0.0
      %v212 = vld [vmem:[%s1] sm:$0xff]
      %213 = vst [vmem:[#allocation1] ss:$2 sm:$0xff] %v192
      %v214 = vld.sshfl [vmem:[#allocation1] sm:$0xff pattern:$0x75316420]
      %v215 = vld.sshfl [vmem:[#allocation1 + $0x8] sm:$0xff pattern:$0x75316420]
      %218 = vrot.lane.b32.xlu0 %v214, 16
      %v219 = vpop.permute.xlu0 %218
      %220 = vrot.lane.b32.xlu0 %v215, 16
      %v221 = vpop.permute.xlu0 %220
      %vm222 = vcmp.lt.s32.totalorder %v172, 16
      %v223 = vsel %vm222, %v219, %v221
      %v224 = vsel %vm222, %v221, %v219
      %v225 = vsel %vm174, 1, 0
      %v226 = vsel %vm175, 1, 0
      %vm227 = vcmp.eq.s32.totalorder %v225, 1
      %vm228 = vcmp.eq.s32.totalorder %v226, 1
      %v229 = vsel %vm227, %v224, 0.0
      %v230 = vsel %vm228, %v223, 0.0
      %s231 = scalar_lea.vmem %s1, 8
      %v232 = vld [vmem:[%s231] sm:$0xff]
      %vm233 = vcmask 31744
      %v235 = vsel %vm233, %v232, 0
      %vm237 = vcmask 1043456
      %v239 = vsel %vm237, %v229, 0
      %v242 = vsel %vm237, %v230, 0
      %244 = vmatpush.msra.mxu0 0.0
      %245 = vmatpush.msra.mxu0 0.0
      %246 = vmatpush.msra.mxu0 0.0
      %247 = vmatpush.msra.mxu0 0.0
      %248 = vmatpush.msra.mxu0 0.0
      %249 = vmatpush.msra.mxu0 0.0
      %250 = vmatpush.msra.mxu0 0.0
      %251 = vmatpush.msra.mxu0 0.0
      %252 = vmatpush.msra.mxu0 0.0
      %253 = vmatpush.msra.mxu0 0.0
      %254 = vmatpush.msra.mxu0 0.0
      %255 = vmatpush.msra.mxu0 0.0
      %256 = vmatpush.msra.mxu0 0.0
      %257 = vmatpush.msra.mxu0 0.0
      %258 = vmatpush.msra.mxu0 0.0
      %259 = vmatpush.msra.mxu0 %v239
      %260 = vmatmul.f32.gmra.mxu0 %v235
      %v261 = vpop.f32.mrf.mxu0
      %v262 = vadd.f32 0.0, %v261
      %263 = vdwg.mxu0
      %264 = vmatpush.msra.mxu0 0.0
      %265 = vmatpush.msra.mxu0 0.0
      %266 = vmatpush.msra.mxu0 0.0
      %267 = vmatpush.msra.mxu0 0.0
      %268 = vmatpush.msra.mxu0 0.0
      %269 = vmatpush.msra.mxu0 0.0
      %270 = vmatpush.msra.mxu0 0.0
      %271 = vmatpush.msra.mxu0 0.0
      %272 = vmatpush.msra.mxu0 0.0
      %273 = vmatpush.msra.mxu0 0.0
      %274 = vmatpush.msra.mxu0 0.0
      %275 = vmatpush.msra.mxu0 0.0
      %276 = vmatpush.msra.mxu0 0.0
      %277 = vmatpush.msra.mxu0 0.0
      %278 = vmatpush.msra.mxu0 0.0
      %279 = vmatpush.msra.mxu0 %v242
      %280 = vmatmul.f32.gmra.mxu0 %v235
      %v281 = vpop.f32.mrf.mxu0
      %v282 = vadd.f32 0.0, %v281
      %283 = vdwg.mxu0
      %v285 = vsel %vm233, %v212, 0
      %v288 = vsel %vm237, %v210, 0
      %v291 = vsel %vm237, %v211, 0
      %293 = vmatpush.msra.mxu0 0.0
      %294 = vmatpush.msra.mxu0 0.0
      %295 = vmatpush.msra.mxu0 0.0
      %296 = vmatpush.msra.mxu0 0.0
      %297 = vmatpush.msra.mxu0 0.0
      %298 = vmatpush.msra.mxu0 0.0
      %299 = vmatpush.msra.mxu0 0.0
      %300 = vmatpush.msra.mxu0 0.0
      %301 = vmatpush.msra.mxu0 0.0
      %302 = vmatpush.msra.mxu0 0.0
      %303 = vmatpush.msra.mxu0 0.0
      %304 = vmatpush.msra.mxu0 0.0
      %305 = vmatpush.msra.mxu0 0.0
      %306 = vmatpush.msra.mxu0 0.0
      %307 = vmatpush.msra.mxu0 0.0
      %308 = vmatpush.msra.mxu0 %v288
      %309 = vmatmul.f32.gmra.mxu0 %v285
      %v310 = vpop.f32.mrf.mxu0
      %v311 = vadd.f32 %v262, %v310
      %312 = vdwg.mxu0
      %313 = vmatpush.msra.mxu0 0.0
      %314 = vmatpush.msra.mxu0 0.0
      %315 = vmatpush.msra.mxu0 0.0
      %316 = vmatpush.msra.mxu0 0.0
      %317 = vmatpush.msra.mxu0 0.0
      %318 = vmatpush.msra.mxu0 0.0
      %319 = vmatpush.msra.mxu0 0.0
      %320 = vmatpush.msra.mxu0 0.0
      %321 = vmatpush.msra.mxu0 0.0
      %322 = vmatpush.msra.mxu0 0.0
      %323 = vmatpush.msra.mxu0 0.0
      %324 = vmatpush.msra.mxu0 0.0
      %325 = vmatpush.msra.mxu0 0.0
      %326 = vmatpush.msra.mxu0 0.0
      %327 = vmatpush.msra.mxu0 0.0
      %328 = vmatpush.msra.mxu0 %v291
      %329 = vmatmul.f32.gmra.mxu0 %v285
      %v330 = vpop.f32.mrf.mxu0
      %v331 = vadd.f32 %v282, %v330
      %332 = vdwg.mxu0
      %333 = vst [vmem:[#allocation1] ss:$2 sm:$0xff] %v192
      %v334 = vld.sshfl [vmem:[#allocation1] sm:$0xff pattern:$0x75316420]
      %v335 = vld.sshfl [vmem:[#allocation1 + $0x8] sm:$0xff pattern:$0x75316420]
      %338 = vrot.lane.b32.xlu0 %v334, 15
      %v339 = vpop.permute.xlu0 %338
      %340 = vrot.lane.b32.xlu0 %v335, 15
      %v341 = vpop.permute.xlu0 %340
      %vm342 = vcmp.lt.s32.totalorder %v172, 15
      %v343 = vsel %vm342, %v339, %v341
      %v344 = vsel %vm342, %v341, %v339
      %v345 = vsel %vm184, 1, 0
      %v346 = vsel %vm185, 1, 0
      %vm347 = vcmp.eq.s32.totalorder %v345, 1
      %vm348 = vcmp.eq.s32.totalorder %v346, 1
      %v349 = vsel %vm347, %v344, 0.0
      %v350 = vsel %vm348, %v343, 0.0
      %s351 = scalar_lea.vmem %s1, 16
      %v352 = vld [vmem:[%s351] sm:$0xff]
      %v354 = vsel %vm233, %v352, 0
      %v357 = vsel %vm237, %v349, 0
      %v360 = vsel %vm237, %v350, 0
      %362 = vmatpush.msra.mxu0 0.0
      %363 = vmatpush.msra.mxu0 0.0
      %364 = vmatpush.msra.mxu0 0.0
      %365 = vmatpush.msra.mxu0 0.0
      %366 = vmatpush.msra.mxu0 0.0
      %367 = vmatpush.msra.mxu0 0.0
      %368 = vmatpush.msra.mxu0 0.0
      %369 = vmatpush.msra.mxu0 0.0
      %370 = vmatpush.msra.mxu0 0.0
      %371 = vmatpush.msra.mxu0 0.0
      %372 = vmatpush.msra.mxu0 0.0
      %373 = vmatpush.msra.mxu0 0.0
      %374 = vmatpush.msra.mxu0 0.0
      %375 = vmatpush.msra.mxu0 0.0
      %376 = vmatpush.msra.mxu0 0.0
      %377 = vmatpush.msra.mxu0 %v357
      %378 = vmatmul.f32.gmra.mxu0 %v354
      %v379 = vpop.f32.mrf.mxu0
      %v380 = vadd.f32 0.0, %v379
      %381 = vdwg.mxu0
      %382 = vmatpush.msra.mxu0 0.0
      %383 = vmatpush.msra.mxu0 0.0
      %384 = vmatpush.msra.mxu0 0.0
      %385 = vmatpush.msra.mxu0 0.0
      %386 = vmatpush.msra.mxu0 0.0
      %387 = vmatpush.msra.mxu0 0.0
      %388 = vmatpush.msra.mxu0 0.0
      %389 = vmatpush.msra.mxu0 0.0
      %390 = vmatpush.msra.mxu0 0.0
      %391 = vmatpush.msra.mxu0 0.0
      %392 = vmatpush.msra.mxu0 0.0
      %393 = vmatpush.msra.mxu0 0.0
      %394 = vmatpush.msra.mxu0 0.0
      %395 = vmatpush.msra.mxu0 0.0
      %396 = vmatpush.msra.mxu0 0.0
      %397 = vmatpush.msra.mxu0 %v360
      %398 = vmatmul.f32.gmra.mxu0 %v354
      %v399 = vpop.f32.mrf.mxu0
      %v400 = vadd.f32 0.0, %v399
      %401 = vdwg.mxu0
      %v402 = vadd.f32 %v311, %v380
      %v403 = vadd.f32 %v331, %v400
      %404 = vst [vmem:[#allocation1] ss:$2 sm:$0xff] %v192
      %v405 = vld.sshfl [vmem:[#allocation1] sm:$0xff pattern:$0x75316420]
      %v406 = vld.sshfl [vmem:[#allocation1 + $0x8] sm:$0xff pattern:$0x75316420]
      %409 = vrot.lane.b32.xlu0 %v405, 1
      %v410 = vpop.permute.xlu0 %409
      %411 = vrot.lane.b32.xlu0 %v406, 1
      %v412 = vpop.permute.xlu0 %411
      %vm413 = vcmp.lt.s32.totalorder %v172, 1
      %v414 = vsel %vm413, %v410, %v412
      %v415 = vsel %vm413, %v412, %v410
      %v416 = vsel %vm178, 1, 0
      %v417 = vsel %vm179, 1, 0
      %vm418 = vcmp.eq.s32.totalorder %v416, 1
      %vm419 = vcmp.eq.s32.totalorder %v417, 1
      %v420 = vsel %vm418, %v415, 0.0
      %v421 = vsel %vm419, %v414, 0.0
      %s422 = scalar_lea.vmem %s1, 24
      %v423 = vld [vmem:[%s422] sm:$0xff]
      %v425 = vsel %vm233, %v423, 0
      %v428 = vsel %vm237, %v420, 0
      %v431 = vsel %vm237, %v421, 0
      %433 = vmatpush.msra.mxu0 0.0
      %434 = vmatpush.msra.mxu0 0.0
      %435 = vmatpush.msra.mxu0 0.0
      %436 = vmatpush.msra.mxu0 0.0
      %437 = vmatpush.msra.mxu0 0.0
      %438 = vmatpush.msra.mxu0 0.0
      %439 = vmatpush.msra.mxu0 0.0
      %440 = vmatpush.msra.mxu0 0.0
      %441 = vmatpush.msra.mxu0 0.0
      %442 = vmatpush.msra.mxu0 0.0
      %443 = vmatpush.msra.mxu0 0.0
      %444 = vmatpush.msra.mxu0 0.0
      %445 = vmatpush.msra.mxu0 0.0
      %446 = vmatpush.msra.mxu0 0.0
      %447 = vmatpush.msra.mxu0 0.0
      %448 = vmatpush.msra.mxu0 %v428
      %449 = vmatmul.f32.gmra.mxu0 %v425
      %v450 = vpop.f32.mrf.mxu0
      %v451 = vadd.f32 0.0, %v450
      %452 = vdwg.mxu0
      %453 = vmatpush.msra.mxu0 0.0
      %454 = vmatpush.msra.mxu0 0.0
      %455 = vmatpush.msra.mxu0 0.0
      %456 = vmatpush.msra.mxu0 0.0
      %457 = vmatpush.msra.mxu0 0.0
      %458 = vmatpush.msra.mxu0 0.0
      %459 = vmatpush.msra.mxu0 0.0
      %460 = vmatpush.msra.mxu0 0.0
      %461 = vmatpush.msra.mxu0 0.0
      %462 = vmatpush.msra.mxu0 0.0
      %463 = vmatpush.msra.mxu0 0.0
      %464 = vmatpush.msra.mxu0 0.0
      %465 = vmatpush.msra.mxu0 0.0
      %466 = vmatpush.msra.mxu0 0.0
      %467 = vmatpush.msra.mxu0 0.0
      %468 = vmatpush.msra.mxu0 %v431
      %469 = vmatmul.f32.gmra.mxu0 %v425
      %v470 = vpop.f32.mrf.mxu0
      %v471 = vadd.f32 0.0, %v470
      %472 = vdwg.mxu0
      %v473 = vadd.f32 %v402, %v451
      %v474 = vadd.f32 %v403, %v471
      %s475 = scalar_lea.vmem %s1, 32
      %v476 = vld [vmem:[%s475] sm:$0xff]
      %477 = vst [vmem:[#allocation1] ss:$2 sm:$0xff] %v192
      %v478 = vld.sshfl [vmem:[#allocation1] sm:$0xff pattern:$0x75316420]
      %v479 = vld.sshfl [vmem:[#allocation1 + $0x8] sm:$0xff pattern:$0x75316420]
      %v481 = vsel %vm233, %v476, 0
      %v483 = vsel %vm237, %v478, 0
      %v485 = vsel %vm237, %v479, 0
      %487 = vmatpush.msra.mxu0 0.0
      %488 = vmatpush.msra.mxu0 0.0
      %489 = vmatpush.msra.mxu0 0.0
      %490 = vmatpush.msra.mxu0 0.0
      %491 = vmatpush.msra.mxu0 0.0
      %492 = vmatpush.msra.mxu0 0.0
      %493 = vmatpush.msra.mxu0 0.0
      %494 = vmatpush.msra.mxu0 0.0
      %495 = vmatpush.msra.mxu0 0.0
      %496 = vmatpush.msra.mxu0 0.0
      %497 = vmatpush.msra.mxu0 0.0
      %498 = vmatpush.msra.mxu0 0.0
      %499 = vmatpush.msra.mxu0 0.0
      %500 = vmatpush.msra.mxu0 0.0
      %501 = vmatpush.msra.mxu0 0.0
      %502 = vmatpush.msra.mxu0 %v483
      %503 = vmatmul.f32.gmra.mxu0 %v481
      %v504 = vpop.f32.mrf.mxu0
      %v505 = vadd.f32 0.0, %v504
      %506 = vdwg.mxu0
      %507 = vmatpush.msra.mxu0 0.0
      %508 = vmatpush.msra.mxu0 0.0
      %509 = vmatpush.msra.mxu0 0.0
      %510 = vmatpush.msra.mxu0 0.0
      %511 = vmatpush.msra.mxu0 0.0
      %512 = vmatpush.msra.mxu0 0.0
      %513 = vmatpush.msra.mxu0 0.0
      %514 = vmatpush.msra.mxu0 0.0
      %515 = vmatpush.msra.mxu0 0.0
      %516 = vmatpush.msra.mxu0 0.0
      %517 = vmatpush.msra.mxu0 0.0
      %518 = vmatpush.msra.mxu0 0.0
      %519 = vmatpush.msra.mxu0 0.0
      %520 = vmatpush.msra.mxu0 0.0
      %521 = vmatpush.msra.mxu0 0.0
      %522 = vmatpush.msra.mxu0 %v485
      %523 = vmatmul.f32.gmra.mxu0 %v481
      %v524 = vpop.f32.mrf.mxu0
      %v525 = vadd.f32 0.0, %v524
      %526 = vdwg.mxu0
      %v527 = vadd.f32 %v473, %v505
      %v528 = vadd.f32 %v474, %v525
      %529 = vst [vmem:[#allocation1] ss:$2 sm:$0xff] %v192
      %v530 = vld.sshfl [vmem:[#allocation1] sm:$0xff pattern:$0x75316420]
      %v531 = vld.sshfl [vmem:[#allocation1 + $0x8] sm:$0xff pattern:$0x75316420]
      %534 = vrot.lane.b32.xlu0 %v530, 127
      %v535 = vpop.permute.xlu0 %534
      %536 = vrot.lane.b32.xlu0 %v531, 127
      %v537 = vpop.permute.xlu0 %536
      %vm538 = vcmp.lt.s32.totalorder %v172, 127
      %v539 = vsel %vm538, %v535, %v537
      %v540 = vsel %vm538, %v537, %v535
      %v541 = vsel %vm182, 1, 0
      %v542 = vsel %vm183, 1, 0
      %vm543 = vcmp.eq.s32.totalorder %v541, 1
      %vm544 = vcmp.eq.s32.totalorder %v542, 1
      %v545 = vsel %vm543, %v539, 0.0
      %v546 = vsel %vm544, %v540, 0.0
      %s547 = scalar_lea.vmem %s1, 40
      %v548 = vld [vmem:[%s547] sm:$0xff]
      %v550 = vsel %vm233, %v548, 0
      %v553 = vsel %vm237, %v545, 0
      %v556 = vsel %vm237, %v546, 0
      %558 = vmatpush.msra.mxu0 0.0
      %559 = vmatpush.msra.mxu0 0.0
      %560 = vmatpush.msra.mxu0 0.0
      %561 = vmatpush.msra.mxu0 0.0
      %562 = vmatpush.msra.mxu0 0.0
      %563 = vmatpush.msra.mxu0 0.0
      %564 = vmatpush.msra.mxu0 0.0
      %565 = vmatpush.msra.mxu0 0.0
      %566 = vmatpush.msra.mxu0 0.0
      %567 = vmatpush.msra.mxu0 0.0
      %568 = vmatpush.msra.mxu0 0.0
      %569 = vmatpush.msra.mxu0 0.0
      %570 = vmatpush.msra.mxu0 0.0
      %571 = vmatpush.msra.mxu0 0.0
      %572 = vmatpush.msra.mxu0 0.0
      %573 = vmatpush.msra.mxu0 %v553
      %574 = vmatmul.f32.gmra.mxu0 %v550
      %v575 = vpop.f32.mrf.mxu0
      %v576 = vadd.f32 0.0, %v575
      %577 = vdwg.mxu0
      %578 = vmatpush.msra.mxu0 0.0
      %579 = vmatpush.msra.mxu0 0.0
      %580 = vmatpush.msra.mxu0 0.0
      %581 = vmatpush.msra.mxu0 0.0
      %582 = vmatpush.msra.mxu0 0.0
      %583 = vmatpush.msra.mxu0 0.0
      %584 = vmatpush.msra.mxu0 0.0
      %585 = vmatpush.msra.mxu0 0.0
      %586 = vmatpush.msra.mxu0 0.0
      %587 = vmatpush.msra.mxu0 0.0
      %588 = vmatpush.msra.mxu0 0.0
      %589 = vmatpush.msra.mxu0 0.0
      %590 = vmatpush.msra.mxu0 0.0
      %591 = vmatpush.msra.mxu0 0.0
      %592 = vmatpush.msra.mxu0 0.0
      %593 = vmatpush.msra.mxu0 %v556
      %594 = vmatmul.f32.gmra.mxu0 %v550
      %v595 = vpop.f32.mrf.mxu0
      %v596 = vadd.f32 0.0, %v595
      %597 = vdwg.mxu0
      %v598 = vadd.f32 %v527, %v576
      %v599 = vadd.f32 %v528, %v596
      %600 = vst [vmem:[#allocation1] ss:$2 sm:$0xff] %v192
      %v601 = vld.sshfl [vmem:[#allocation1] sm:$0xff pattern:$0x75316420]
      %v602 = vld.sshfl [vmem:[#allocation1 + $0x8] sm:$0xff pattern:$0x75316420]
      %605 = vrot.lane.b32.xlu0 %v601, 113
      %v606 = vpop.permute.xlu0 %605
      %607 = vrot.lane.b32.xlu0 %v602, 113
      %v608 = vpop.permute.xlu0 %607
      %vm609 = vcmp.lt.s32.totalorder %v172, 113
      %v610 = vsel %vm609, %v606, %v608
      %v611 = vsel %vm609, %v608, %v606
      %v612 = vsel %vm188, 1, 0
      %v613 = vsel %vm189, 1, 0
      %vm614 = vcmp.eq.s32.totalorder %v612, 1
      %vm615 = vcmp.eq.s32.totalorder %v613, 1
      %v616 = vsel %vm614, %v610, 0.0
      %v617 = vsel %vm615, %v611, 0.0
      %s618 = scalar_lea.vmem %s1, 48
      %v619 = vld [vmem:[%s618] sm:$0xff]
      %v621 = vsel %vm233, %v619, 0
      %v624 = vsel %vm237, %v616, 0
      %v627 = vsel %vm237, %v617, 0
      %629 = vmatpush.msra.mxu0 0.0
      %630 = vmatpush.msra.mxu0 0.0
      %631 = vmatpush.msra.mxu0 0.0
      %632 = vmatpush.msra.mxu0 0.0
      %633 = vmatpush.msra.mxu0 0.0
      %634 = vmatpush.msra.mxu0 0.0
      %635 = vmatpush.msra.mxu0 0.0
      %636 = vmatpush.msra.mxu0 0.0
      %637 = vmatpush.msra.mxu0 0.0
      %638 = vmatpush.msra.mxu0 0.0
      %639 = vmatpush.msra.mxu0 0.0
      %640 = vmatpush.msra.mxu0 0.0
      %641 = vmatpush.msra.mxu0 0.0
      %642 = vmatpush.msra.mxu0 0.0
      %643 = vmatpush.msra.mxu0 0.0
      %644 = vmatpush.msra.mxu0 %v624
      %645 = vmatmul.f32.gmra.mxu0 %v621
      %v646 = vpop.f32.mrf.mxu0
      %v647 = vadd.f32 0.0, %v646
      %648 = vdwg.mxu0
      %649 = vmatpush.msra.mxu0 0.0
      %650 = vmatpush.msra.mxu0 0.0
      %651 = vmatpush.msra.mxu0 0.0
      %652 = vmatpush.msra.mxu0 0.0
      %653 = vmatpush.msra.mxu0 0.0
      %654 = vmatpush.msra.mxu0 0.0
      %655 = vmatpush.msra.mxu0 0.0
      %656 = vmatpush.msra.mxu0 0.0
      %657 = vmatpush.msra.mxu0 0.0
      %658 = vmatpush.msra.mxu0 0.0
      %659 = vmatpush.msra.mxu0 0.0
      %660 = vmatpush.msra.mxu0 0.0
      %661 = vmatpush.msra.mxu0 0.0
      %662 = vmatpush.msra.mxu0 0.0
      %663 = vmatpush.msra.mxu0 0.0
      %664 = vmatpush.msra.mxu0 %v627
      %665 = vmatmul.f32.gmra.mxu0 %v621
      %v666 = vpop.f32.mrf.mxu0
      %v667 = vadd.f32 0.0, %v666
      %668 = vdwg.mxu0
      %v669 = vadd.f32 %v598, %v647
      %v670 = vadd.f32 %v599, %v667
      %671 = vst [vmem:[#allocation1] ss:$2 sm:$0xff] %v192
      %v672 = vld.sshfl [vmem:[#allocation1] sm:$0xff pattern:$0x75316420]
      %v673 = vld.sshfl [vmem:[#allocation1 + $0x8] sm:$0xff pattern:$0x75316420]
      %676 = vrot.lane.b32.xlu0 %v672, 112
      %v677 = vpop.permute.xlu0 %676
      %678 = vrot.lane.b32.xlu0 %v673, 112
      %v679 = vpop.permute.xlu0 %678
      %vm680 = vcmp.lt.s32.totalorder %v172, 112
      %v681 = vsel %vm680, %v677, %v679
      %v682 = vsel %vm680, %v679, %v677
      %v683 = vsel %vm186, 1, 0
      %v684 = vsel %vm187, 1, 0
      %vm685 = vcmp.eq.s32.totalorder %v683, 1
      %vm686 = vcmp.eq.s32.totalorder %v684, 1
      %v687 = vsel %vm685, %v681, 0.0
      %v688 = vsel %vm686, %v682, 0.0
      %s689 = scalar_lea.vmem %s1, 56
      %v690 = vld [vmem:[%s689] sm:$0xff]
      %v692 = vsel %vm233, %v690, 0
      %v695 = vsel %vm237, %v687, 0
      %v698 = vsel %vm237, %v688, 0
      %700 = vmatpush.msra.mxu0 0.0
      %701 = vmatpush.msra.mxu0 0.0
      %702 = vmatpush.msra.mxu0 0.0
      %703 = vmatpush.msra.mxu0 0.0
      %704 = vmatpush.msra.mxu0 0.0
      %705 = vmatpush.msra.mxu0 0.0
      %706 = vmatpush.msra.mxu0 0.0
      %707 = vmatpush.msra.mxu0 0.0
      %708 = vmatpush.msra.mxu0 0.0
      %709 = vmatpush.msra.mxu0 0.0
      %710 = vmatpush.msra.mxu0 0.0
      %711 = vmatpush.msra.mxu0 0.0
      %712 = vmatpush.msra.mxu0 0.0
      %713 = vmatpush.msra.mxu0 0.0
      %714 = vmatpush.msra.mxu0 0.0
      %715 = vmatpush.msra.mxu0 %v695
      %716 = vmatmul.f32.gmra.mxu0 %v692
      %v717 = vpop.f32.mrf.mxu0
      %v718 = vadd.f32 0.0, %v717
      %719 = vdwg.mxu0
      %720 = vmatpush.msra.mxu0 0.0
      %721 = vmatpush.msra.mxu0 0.0
      %722 = vmatpush.msra.mxu0 0.0
      %723 = vmatpush.msra.mxu0 0.0
      %724 = vmatpush.msra.mxu0 0.0
      %725 = vmatpush.msra.mxu0 0.0
      %726 = vmatpush.msra.mxu0 0.0
      %727 = vmatpush.msra.mxu0 0.0
      %728 = vmatpush.msra.mxu0 0.0
      %729 = vmatpush.msra.mxu0 0.0
      %730 = vmatpush.msra.mxu0 0.0
      %731 = vmatpush.msra.mxu0 0.0
      %732 = vmatpush.msra.mxu0 0.0
      %733 = vmatpush.msra.mxu0 0.0
      %734 = vmatpush.msra.mxu0 0.0
      %735 = vmatpush.msra.mxu0 %v698
      %736 = vmatmul.f32.gmra.mxu0 %v692
      %v737 = vpop.f32.mrf.mxu0
      %v738 = vadd.f32 0.0, %v737
      %739 = vdwg.mxu0
      %v740 = vadd.f32 %v669, %v718
      %v741 = vadd.f32 %v670, %v738
      %742 = vst [vmem:[#allocation1] ss:$2 sm:$0xff] %v192
      %v743 = vld.sshfl [vmem:[#allocation1] sm:$0xff pattern:$0x75316420]
      %v744 = vld.sshfl [vmem:[#allocation1 + $0x8] sm:$0xff pattern:$0x75316420]
      %747 = vrot.lane.b32.xlu0 %v743, 111
      %v748 = vpop.permute.xlu0 %747
      %749 = vrot.lane.b32.xlu0 %v744, 111
      %v750 = vpop.permute.xlu0 %749
      %vm751 = vcmp.lt.s32.totalorder %v172, 111
      %v752 = vsel %vm751, %v748, %v750
      %v753 = vsel %vm751, %v750, %v748
      %v754 = vsel %vm190, 1, 0
      %v755 = vsel %vm191, 1, 0
      %vm756 = vcmp.eq.s32.totalorder %v754, 1
      %vm757 = vcmp.eq.s32.totalorder %v755, 1
      %v758 = vsel %vm756, %v752, 0.0
      %v759 = vsel %vm757, %v753, 0.0
      %s760 = scalar_lea.vmem %s1, 64
      %v761 = vld [vmem:[%s760] sm:$0xff]
      %v763 = vsel %vm233, %v761, 0
      %v766 = vsel %vm237, %v758, 0
      %v769 = vsel %vm237, %v759, 0
      %771 = vmatpush.msra.mxu0 0.0
      %772 = vmatpush.msra.mxu0 0.0
      %773 = vmatpush.msra.mxu0 0.0
      %774 = vmatpush.msra.mxu0 0.0
      %775 = vmatpush.msra.mxu0 0.0
      %776 = vmatpush.msra.mxu0 0.0
      %777 = vmatpush.msra.mxu0 0.0
      %778 = vmatpush.msra.mxu0 0.0
      %779 = vmatpush.msra.mxu0 0.0
      %780 = vmatpush.msra.mxu0 0.0
      %781 = vmatpush.msra.mxu0 0.0
      %782 = vmatpush.msra.mxu0 0.0
      %783 = vmatpush.msra.mxu0 0.0
      %784 = vmatpush.msra.mxu0 0.0
      %785 = vmatpush.msra.mxu0 0.0
      %786 = vmatpush.msra.mxu0 %v766
      %787 = vmatmul.f32.gmra.mxu0 %v763
      %v788 = vpop.f32.mrf.mxu0
      %v789 = vadd.f32 0.0, %v788
      %790 = vdwg.mxu0
      %791 = vmatpush.msra.mxu0 0.0
      %792 = vmatpush.msra.mxu0 0.0
      %793 = vmatpush.msra.mxu0 0.0
      %794 = vmatpush.msra.mxu0 0.0
      %795 = vmatpush.msra.mxu0 0.0
      %796 = vmatpush.msra.mxu0 0.0
      %797 = vmatpush.msra.mxu0 0.0
      %798 = vmatpush.msra.mxu0 0.0
      %799 = vmatpush.msra.mxu0 0.0
      %800 = vmatpush.msra.mxu0 0.0
      %801 = vmatpush.msra.mxu0 0.0
      %802 = vmatpush.msra.mxu0 0.0
      %803 = vmatpush.msra.mxu0 0.0
      %804 = vmatpush.msra.mxu0 0.0
      %805 = vmatpush.msra.mxu0 0.0
      %806 = vmatpush.msra.mxu0 %v769
      %807 = vmatmul.f32.gmra.mxu0 %v763
      %v808 = vpop.f32.mrf.mxu0
      %v809 = vadd.f32 0.0, %v808
      %810 = vdwg.mxu0
      %v811 = vadd.f32 %v740, %v789
      %v812 = vadd.f32 %v741, %v809
      %v813 = vmax.f32 %v811, 0.0
      %v814 = vmax.f32 %v812, 0.0
      %815 = vrot.lane.b32.xlu0 %v813, 17
      %v816 = vpop.permute.xlu0 %815
      %817 = vrot.lane.b32.xlu0 %v814, 17
      %v818 = vpop.permute.xlu0 %817
      %v819 = vsel %vm203, %v816, %v818
      %v820 = vsel %vm203, %v818, %v816
      %v821 = vsel %vm208, %v820, 0.0
      %v822 = vsel %vm209, %v819, 0.0
      %v823 = vld [vmem:[%s2] sm:$0xf]
      %824 = vrot.lane.b32.xlu0 %v813, 16
      %v825 = vpop.permute.xlu0 %824
      %826 = vrot.lane.b32.xlu0 %v814, 16
      %v827 = vpop.permute.xlu0 %826
      %v828 = vsel %vm222, %v825, %v827
      %v829 = vsel %vm222, %v827, %v825
      %v830 = vsel %vm227, %v829, 0.0
      %v831 = vsel %vm228, %v828, 0.0
      %s832 = scalar_lea.vmem %s2, 4
      %v833 = vld [vmem:[%s832] sm:$0xf]
      %vm834 = vcmask 64512
      %v836 = vsel %vm834, %v833, 0
      %838 = vmatpush.msra.mxu0 0.0
      %839 = vmatpush.msra.mxu0 0.0
      %840 = vmatpush.msra.mxu0 0.0
      %841 = vmatpush.msra.mxu0 0.0
      %842 = vmatpush.msra.mxu0 0.0
      %843 = vmatpush.msra.mxu0 0.0
      %844 = vmatpush.msra.mxu0 0.0
      %845 = vmatpush.msra.mxu0 0.0
      %846 = vmatpush.msra.mxu0 0.0
      %847 = vmatpush.msra.mxu0 0.0
      %848 = vmatpush.msra.mxu0 0.0
      %849 = vmatpush.msra.mxu0 0.0
      %850 = vmatpush.msra.mxu0 0.0
      %851 = vmatpush.msra.mxu0 0.0
      %852 = vmatpush.msra.mxu0 0.0
      %853 = vmatpush.msra.mxu0 %v830
      %854 = vmatmul.f32.gmra.mxu0 %v836
      %v855 = vpop.f32.mrf.mxu0
      %v856 = vadd.f32 0.0, %v855
      %857 = vdwg.mxu0
      %858 = vmatpush.msra.mxu0 0.0
      %859 = vmatpush.msra.mxu0 0.0
      %860 = vmatpush.msra.mxu0 0.0
      %861 = vmatpush.msra.mxu0 0.0
      %862 = vmatpush.msra.mxu0 0.0
      %863 = vmatpush.msra.mxu0 0.0
      %864 = vmatpush.msra.mxu0 0.0
      %865 = vmatpush.msra.mxu0 0.0
      %866 = vmatpush.msra.mxu0 0.0
      %867 = vmatpush.msra.mxu0 0.0
      %868 = vmatpush.msra.mxu0 0.0
      %869 = vmatpush.msra.mxu0 0.0
      %870 = vmatpush.msra.mxu0 0.0
      %871 = vmatpush.msra.mxu0 0.0
      %872 = vmatpush.msra.mxu0 0.0
      %873 = vmatpush.msra.mxu0 %v831
      %874 = vmatmul.f32.gmra.mxu0 %v836
      %v875 = vpop.f32.mrf.mxu0
      %v876 = vadd.f32 0.0, %v875
      %877 = vdwg.mxu0
      %v879 = vsel %vm834, %v823, 0
      %881 = vmatpush.msra.mxu0 0.0
      %882 = vmatpush.msra.mxu0 0.0
      %883 = vmatpush.msra.mxu0 0.0
      %884 = vmatpush.msra.mxu0 0.0
      %885 = vmatpush.msra.mxu0 0.0
      %886 = vmatpush.msra.mxu0 0.0
      %887 = vmatpush.msra.mxu0 0.0
      %888 = vmatpush.msra.mxu0 0.0
      %889 = vmatpush.msra.mxu0 0.0
      %890 = vmatpush.msra.mxu0 0.0
      %891 = vmatpush.msra.mxu0 0.0
      %892 = vmatpush.msra.mxu0 0.0
      %893 = vmatpush.msra.mxu0 0.0
      %894 = vmatpush.msra.mxu0 0.0
      %895 = vmatpush.msra.mxu0 0.0
      %896 = vmatpush.msra.mxu0 %v821
      %897 = vmatmul.f32.gmra.mxu0 %v879
      %v898 = vpop.f32.mrf.mxu0
      %v899 = vadd.f32 %v856, %v898
      %900 = vdwg.mxu0
      %901 = vmatpush.msra.mxu0 0.0
      %902 = vmatpush.msra.mxu0 0.0
      %903 = vmatpush.msra.mxu0 0.0
      %904 = vmatpush.msra.mxu0 0.0
      %905 = vmatpush.msra.mxu0 0.0
      %906 = vmatpush.msra.mxu0 0.0
      %907 = vmatpush.msra.mxu0 0.0
      %908 = vmatpush.msra.mxu0 0.0
      %909 = vmatpush.msra.mxu0 0.0
      %910 = vmatpush.msra.mxu0 0.0
      %911 = vmatpush.msra.mxu0 0.0
      %912 = vmatpush.msra.mxu0 0.0
      %913 = vmatpush.msra.mxu0 0.0
      %914 = vmatpush.msra.mxu0 0.0
      %915 = vmatpush.msra.mxu0 0.0
      %916 = vmatpush.msra.mxu0 %v822
      %917 = vmatmul.f32.gmra.mxu0 %v879
      %v918 = vpop.f32.mrf.mxu0
      %v919 = vadd.f32 %v876, %v918
      %920 = vdwg.mxu0
      %921 = vrot.lane.b32.xlu0 %v813, 15
      %v922 = vpop.permute.xlu0 %921
      %923 = vrot.lane.b32.xlu0 %v814, 15
      %v924 = vpop.permute.xlu0 %923
      %v925 = vsel %vm342, %v922, %v924
      %v926 = vsel %vm342, %v924, %v922
      %v927 = vsel %vm347, %v926, 0.0
      %v928 = vsel %vm348, %v925, 0.0
      %s929 = scalar_lea.vmem %s2, 8
      %v930 = vld [vmem:[%s929] sm:$0xf]
      %v932 = vsel %vm834, %v930, 0
      %934 = vmatpush.msra.mxu0 0.0
      %935 = vmatpush.msra.mxu0 0.0
      %936 = vmatpush.msra.mxu0 0.0
      %937 = vmatpush.msra.mxu0 0.0
      %938 = vmatpush.msra.mxu0 0.0
      %939 = vmatpush.msra.mxu0 0.0
      %940 = vmatpush.msra.mxu0 0.0
      %941 = vmatpush.msra.mxu0 0.0
      %942 = vmatpush.msra.mxu0 0.0
      %943 = vmatpush.msra.mxu0 0.0
      %944 = vmatpush.msra.mxu0 0.0
      %945 = vmatpush.msra.mxu0 0.0
      %946 = vmatpush.msra.mxu0 0.0
      %947 = vmatpush.msra.mxu0 0.0
      %948 = vmatpush.msra.mxu0 0.0
      %949 = vmatpush.msra.mxu0 %v927
      %950 = vmatmul.f32.gmra.mxu0 %v932
      %v951 = vpop.f32.mrf.mxu0
      %v952 = vadd.f32 0.0, %v951
      %953 = vdwg.mxu0
      %954 = vmatpush.msra.mxu0 0.0
      %955 = vmatpush.msra.mxu0 0.0
      %956 = vmatpush.msra.mxu0 0.0
      %957 = vmatpush.msra.mxu0 0.0
      %958 = vmatpush.msra.mxu0 0.0
      %959 = vmatpush.msra.mxu0 0.0
      %960 = vmatpush.msra.mxu0 0.0
      %961 = vmatpush.msra.mxu0 0.0
      %962 = vmatpush.msra.mxu0 0.0
      %963 = vmatpush.msra.mxu0 0.0
      %964 = vmatpush.msra.mxu0 0.0
      %965 = vmatpush.msra.mxu0 0.0
      %966 = vmatpush.msra.mxu0 0.0
      %967 = vmatpush.msra.mxu0 0.0
      %968 = vmatpush.msra.mxu0 0.0
      %969 = vmatpush.msra.mxu0 %v928
      %970 = vmatmul.f32.gmra.mxu0 %v932
      %v971 = vpop.f32.mrf.mxu0
      %v972 = vadd.f32 0.0, %v971
      %973 = vdwg.mxu0
      %v974 = vadd.f32 %v899, %v952
      %v975 = vadd.f32 %v919, %v972
      %976 = vrot.lane.b32.xlu0 %v813, 1
      %v977 = vpop.permute.xlu0 %976
      %978 = vrot.lane.b32.xlu0 %v814, 1
      %v979 = vpop.permute.xlu0 %978
      %v980 = vsel %vm413, %v977, %v979
      %v981 = vsel %vm413, %v979, %v977
      %v982 = vsel %vm418, %v981, 0.0
      %v983 = vsel %vm419, %v980, 0.0
      %s984 = scalar_lea.vmem %s2, 12
      %v985 = vld [vmem:[%s984] sm:$0xf]
      %v987 = vsel %vm834, %v985, 0
      %989 = vmatpush.msra.mxu0 0.0
      %990 = vmatpush.msra.mxu0 0.0
      %991 = vmatpush.msra.mxu0 0.0
      %992 = vmatpush.msra.mxu0 0.0
      %993 = vmatpush.msra.mxu0 0.0
      %994 = vmatpush.msra.mxu0 0.0
      %995 = vmatpush.msra.mxu0 0.0
      %996 = vmatpush.msra.mxu0 0.0
      %997 = vmatpush.msra.mxu0 0.0
      %998 = vmatpush.msra.mxu0 0.0
      %999 = vmatpush.msra.mxu0 0.0
      %1000 = vmatpush.msra.mxu0 0.0
      %1001 = vmatpush.msra.mxu0 0.0
      %1002 = vmatpush.msra.mxu0 0.0
      %1003 = vmatpush.msra.mxu0 0.0
      %1004 = vmatpush.msra.mxu0 %v982
      %1005 = vmatmul.f32.gmra.mxu0 %v987
      %v1006 = vpop.f32.mrf.mxu0
      %v1007 = vadd.f32 0.0, %v1006
      %1008 = vdwg.mxu0
      %1009 = vmatpush.msra.mxu0 0.0
      %1010 = vmatpush.msra.mxu0 0.0
      %1011 = vmatpush.msra.mxu0 0.0
      %1012 = vmatpush.msra.mxu0 0.0
      %1013 = vmatpush.msra.mxu0 0.0
      %1014 = vmatpush.msra.mxu0 0.0
      %1015 = vmatpush.msra.mxu0 0.0
      %1016 = vmatpush.msra.mxu0 0.0
      %1017 = vmatpush.msra.mxu0 0.0
      %1018 = vmatpush.msra.mxu0 0.0
      %1019 = vmatpush.msra.mxu0 0.0
      %1020 = vmatpush.msra.mxu0 0.0
      %1021 = vmatpush.msra.mxu0 0.0
      %1022 = vmatpush.msra.mxu0 0.0
      %1023 = vmatpush.msra.mxu0 0.0
      %1024 = vmatpush.msra.mxu0 %v983
      %1025 = vmatmul.f32.gmra.mxu0 %v987
      %v1026 = vpop.f32.mrf.mxu0
      %v1027 = vadd.f32 0.0, %v1026
      %1028 = vdwg.mxu0
      %v1029 = vadd.f32 %v974, %v1007
      %v1030 = vadd.f32 %v975, %v1027
      %s1031 = scalar_lea.vmem %s2, 16
      %v1032 = vld [vmem:[%s1031] sm:$0xf]
      %v1034 = vsel %vm834, %v1032, 0
      %1036 = vmatpush.msra.mxu0 0.0
      %1037 = vmatpush.msra.mxu0 0.0
      %1038 = vmatpush.msra.mxu0 0.0
      %1039 = vmatpush.msra.mxu0 0.0
      %1040 = vmatpush.msra.mxu0 0.0
      %1041 = vmatpush.msra.mxu0 0.0
      %1042 = vmatpush.msra.mxu0 0.0
      %1043 = vmatpush.msra.mxu0 0.0
      %1044 = vmatpush.msra.mxu0 0.0
      %1045 = vmatpush.msra.mxu0 0.0
      %1046 = vmatpush.msra.mxu0 0.0
      %1047 = vmatpush.msra.mxu0 0.0
      %1048 = vmatpush.msra.mxu0 0.0
      %1049 = vmatpush.msra.mxu0 0.0
      %1050 = vmatpush.msra.mxu0 0.0
      %1051 = vmatpush.msra.mxu0 %v813
      %1052 = vmatmul.f32.gmra.mxu0 %v1034
      %v1053 = vpop.f32.mrf.mxu0
      %v1054 = vadd.f32 0.0, %v1053
      %1055 = vdwg.mxu0
      %1056 = vmatpush.msra.mxu0 0.0
      %1057 = vmatpush.msra.mxu0 0.0
      %1058 = vmatpush.msra.mxu0 0.0
      %1059 = vmatpush.msra.mxu0 0.0
      %1060 = vmatpush.msra.mxu0 0.0
      %1061 = vmatpush.msra.mxu0 0.0
      %1062 = vmatpush.msra.mxu0 0.0
      %1063 = vmatpush.msra.mxu0 0.0
      %1064 = vmatpush.msra.mxu0 0.0
      %1065 = vmatpush.msra.mxu0 0.0
      %1066 = vmatpush.msra.mxu0 0.0
      %1067 = vmatpush.msra.mxu0 0.0
      %1068 = vmatpush.msra.mxu0 0.0
      %1069 = vmatpush.msra.mxu0 0.0
      %1070 = vmatpush.msra.mxu0 0.0
      %1071 = vmatpush.msra.mxu0 %v814
      %1072 = vmatmul.f32.gmra.mxu0 %v1034
      %v1073 = vpop.f32.mrf.mxu0
      %v1074 = vadd.f32 0.0, %v1073
      %1075 = vdwg.mxu0
      %v1076 = vadd.f32 %v1029, %v1054
      %v1077 = vadd.f32 %v1030, %v1074
      %1078 = vrot.lane.b32.xlu0 %v813, 127
      %v1079 = vpop.permute.xlu0 %1078
      %1080 = vrot.lane.b32.xlu0 %v814, 127
      %v1081 = vpop.permute.xlu0 %1080
      %v1082 = vsel %vm538, %v1079, %v1081
      %v1083 = vsel %vm538, %v1081, %v1079
      %v1084 = vsel %vm543, %v1082, 0.0
      %v1085 = vsel %vm544, %v1083, 0.0
      %s1086 = scalar_lea.vmem %s2, 20
      %v1087 = vld [vmem:[%s1086] sm:$0xf]
      %v1089 = vsel %vm834, %v1087, 0
      %1091 = vmatpush.msra.mxu0 0.0
      %1092 = vmatpush.msra.mxu0 0.0
      %1093 = vmatpush.msra.mxu0 0.0
      %1094 = vmatpush.msra.mxu0 0.0
      %1095 = vmatpush.msra.mxu0 0.0
      %1096 = vmatpush.msra.mxu0 0.0
      %1097 = vmatpush.msra.mxu0 0.0
      %1098 = vmatpush.msra.mxu0 0.0
      %1099 = vmatpush.msra.mxu0 0.0
      %1100 = vmatpush.msra.mxu0 0.0
      %1101 = vmatpush.msra.mxu0 0.0
      %1102 = vmatpush.msra.mxu0 0.0
      %1103 = vmatpush.msra.mxu0 0.0
      %1104 = vmatpush.msra.mxu0 0.0
      %1105 = vmatpush.msra.mxu0 0.0
      %1106 = vmatpush.msra.mxu0 %v1084
      %1107 = vmatmul.f32.gmra.mxu0 %v1089
      %v1108 = vpop.f32.mrf.mxu0
      %v1109 = vadd.f32 0.0, %v1108
      %1110 = vdwg.mxu0
      %1111 = vmatpush.msra.mxu0 0.0
      %1112 = vmatpush.msra.mxu0 0.0
      %1113 = vmatpush.msra.mxu0 0.0
      %1114 = vmatpush.msra.mxu0 0.0
      %1115 = vmatpush.msra.mxu0 0.0
      %1116 = vmatpush.msra.mxu0 0.0
      %1117 = vmatpush.msra.mxu0 0.0
      %1118 = vmatpush.msra.mxu0 0.0
      %1119 = vmatpush.msra.mxu0 0.0
      %1120 = vmatpush.msra.mxu0 0.0
      %1121 = vmatpush.msra.mxu0 0.0
      %1122 = vmatpush.msra.mxu0 0.0
      %1123 = vmatpush.msra.mxu0 0.0
      %1124 = vmatpush.msra.mxu0 0.0
      %1125 = vmatpush.msra.mxu0 0.0
      %1126 = vmatpush.msra.mxu0 %v1085
      %1127 = vmatmul.f32.gmra.mxu0 %v1089
      %v1128 = vpop.f32.mrf.mxu0
      %v1129 = vadd.f32 0.0, %v1128
      %1130 = vdwg.mxu0
      %v1131 = vadd.f32 %v1076, %v1109
      %v1132 = vadd.f32 %v1077, %v1129
      %1133 = vrot.lane.b32.xlu0 %v813, 113
      %v1134 = vpop.permute.xlu0 %1133
      %1135 = vrot.lane.b32.xlu0 %v814, 113
      %v1136 = vpop.permute.xlu0 %1135
      %v1137 = vsel %vm609, %v1134, %v1136
      %v1138 = vsel %vm609, %v1136, %v1134
      %v1139 = vsel %vm614, %v1137, 0.0
      %v1140 = vsel %vm615, %v1138, 0.0
      %s1141 = scalar_lea.vmem %s2, 24
      %v1142 = vld [vmem:[%s1141] sm:$0xf]
      %v1144 = vsel %vm834, %v1142, 0
      %1146 = vmatpush.msra.mxu0 0.0
      %1147 = vmatpush.msra.mxu0 0.0
      %1148 = vmatpush.msra.mxu0 0.0
      %1149 = vmatpush.msra.mxu0 0.0
      %1150 = vmatpush.msra.mxu0 0.0
      %1151 = vmatpush.msra.mxu0 0.0
      %1152 = vmatpush.msra.mxu0 0.0
      %1153 = vmatpush.msra.mxu0 0.0
      %1154 = vmatpush.msra.mxu0 0.0
      %1155 = vmatpush.msra.mxu0 0.0
      %1156 = vmatpush.msra.mxu0 0.0
      %1157 = vmatpush.msra.mxu0 0.0
      %1158 = vmatpush.msra.mxu0 0.0
      %1159 = vmatpush.msra.mxu0 0.0
      %1160 = vmatpush.msra.mxu0 0.0
      %1161 = vmatpush.msra.mxu0 %v1139
      %1162 = vmatmul.f32.gmra.mxu0 %v1144
      %v1163 = vpop.f32.mrf.mxu0
      %v1164 = vadd.f32 0.0, %v1163
      %1165 = vdwg.mxu0
      %1166 = vmatpush.msra.mxu0 0.0
      %1167 = vmatpush.msra.mxu0 0.0
      %1168 = vmatpush.msra.mxu0 0.0
      %1169 = vmatpush.msra.mxu0 0.0
      %1170 = vmatpush.msra.mxu0 0.0
      %1171 = vmatpush.msra.mxu0 0.0
      %1172 = vmatpush.msra.mxu0 0.0
      %1173 = vmatpush.msra.mxu0 0.0
      %1174 = vmatpush.msra.mxu0 0.0
      %1175 = vmatpush.msra.mxu0 0.0
      %1176 = vmatpush.msra.mxu0 0.0
      %1177 = vmatpush.msra.mxu0 0.0
      %1178 = vmatpush.msra.mxu0 0.0
      %1179 = vmatpush.msra.mxu0 0.0
      %1180 = vmatpush.msra.mxu0 0.0
      %1181 = vmatpush.msra.mxu0 %v1140
      %1182 = vmatmul.f32.gmra.mxu0 %v1144
      %v1183 = vpop.f32.mrf.mxu0
      %v1184 = vadd.f32 0.0, %v1183
      %1185 = vdwg.mxu0
      %v1186 = vadd.f32 %v1131, %v1164
      %v1187 = vadd.f32 %v1132, %v1184
      %1188 = vrot.lane.b32.xlu0 %v813, 112
      %v1189 = vpop.permute.xlu0 %1188
      %1190 = vrot.lane.b32.xlu0 %v814, 112
      %v1191 = vpop.permute.xlu0 %1190
      %v1192 = vsel %vm680, %v1189, %v1191
      %v1193 = vsel %vm680, %v1191, %v1189
      %v1194 = vsel %vm685, %v1192, 0.0
      %v1195 = vsel %vm686, %v1193, 0.0
      %s1196 = scalar_lea.vmem %s2, 28
      %v1197 = vld [vmem:[%s1196] sm:$0xf]
      %v1199 = vsel %vm834, %v1197, 0
      %1201 = vmatpush.msra.mxu0 0.0
      %1202 = vmatpush.msra.mxu0 0.0
      %1203 = vmatpush.msra.mxu0 0.0
      %1204 = vmatpush.msra.mxu0 0.0
      %1205 = vmatpush.msra.mxu0 0.0
      %1206 = vmatpush.msra.mxu0 0.0
      %1207 = vmatpush.msra.mxu0 0.0
      %1208 = vmatpush.msra.mxu0 0.0
      %1209 = vmatpush.msra.mxu0 0.0
      %1210 = vmatpush.msra.mxu0 0.0
      %1211 = vmatpush.msra.mxu0 0.0
      %1212 = vmatpush.msra.mxu0 0.0
      %1213 = vmatpush.msra.mxu0 0.0
      %1214 = vmatpush.msra.mxu0 0.0
      %1215 = vmatpush.msra.mxu0 0.0
      %1216 = vmatpush.msra.mxu0 %v1194
      %1217 = vmatmul.f32.gmra.mxu0 %v1199
      %v1218 = vpop.f32.mrf.mxu0
      %v1219 = vadd.f32 0.0, %v1218
      %1220 = vdwg.mxu0
      %1221 = vmatpush.msra.mxu0 0.0
      %1222 = vmatpush.msra.mxu0 0.0
      %1223 = vmatpush.msra.mxu0 0.0
      %1224 = vmatpush.msra.mxu0 0.0
      %1225 = vmatpush.msra.mxu0 0.0
      %1226 = vmatpush.msra.mxu0 0.0
      %1227 = vmatpush.msra.mxu0 0.0
      %1228 = vmatpush.msra.mxu0 0.0
      %1229 = vmatpush.msra.mxu0 0.0
      %1230 = vmatpush.msra.mxu0 0.0
      %1231 = vmatpush.msra.mxu0 0.0
      %1232 = vmatpush.msra.mxu0 0.0
      %1233 = vmatpush.msra.mxu0 0.0
      %1234 = vmatpush.msra.mxu0 0.0
      %1235 = vmatpush.msra.mxu0 0.0
      %1236 = vmatpush.msra.mxu0 %v1195
      %1237 = vmatmul.f32.gmra.mxu0 %v1199
      %v1238 = vpop.f32.mrf.mxu0
      %v1239 = vadd.f32 0.0, %v1238
      %1240 = vdwg.mxu0
      %v1241 = vadd.f32 %v1186, %v1219
      %v1242 = vadd.f32 %v1187, %v1239
      %1243 = vrot.lane.b32.xlu0 %v813, 111
      %v1244 = vpop.permute.xlu0 %1243
      %1245 = vrot.lane.b32.xlu0 %v814, 111
      %v1246 = vpop.permute.xlu0 %1245
      %v1247 = vsel %vm751, %v1244, %v1246
      %v1248 = vsel %vm751, %v1246, %v1244
      %v1249 = vsel %vm756, %v1247, 0.0
      %v1250 = vsel %vm757, %v1248, 0.0
      %s1251 = scalar_lea.vmem %s2, 32
      %v1252 = vld [vmem:[%s1251] sm:$0xf]
      %v1254 = vsel %vm834, %v1252, 0
      %1256 = vmatpush.msra.mxu0 0.0
      %1257 = vmatpush.msra.mxu0 0.0
      %1258 = vmatpush.msra.mxu0 0.0
      %1259 = vmatpush.msra.mxu0 0.0
      %1260 = vmatpush.msra.mxu0 0.0
      %1261 = vmatpush.msra.mxu0 0.0
      %1262 = vmatpush.msra.mxu0 0.0
      %1263 = vmatpush.msra.mxu0 0.0
      %1264 = vmatpush.msra.mxu0 0.0
      %1265 = vmatpush.msra.mxu0 0.0
      %1266 = vmatpush.msra.mxu0 0.0
      %1267 = vmatpush.msra.mxu0 0.0
      %1268 = vmatpush.msra.mxu0 0.0
      %1269 = vmatpush.msra.mxu0 0.0
      %1270 = vmatpush.msra.mxu0 0.0
      %1271 = vmatpush.msra.mxu0 %v1249
      %1272 = vmatmul.f32.gmra.mxu0 %v1254
      %v1273 = vpop.f32.mrf.mxu0
      %v1274 = vadd.f32 0.0, %v1273
      %1275 = vdwg.mxu0
      %1276 = vmatpush.msra.mxu0 0.0
      %1277 = vmatpush.msra.mxu0 0.0
      %1278 = vmatpush.msra.mxu0 0.0
      %1279 = vmatpush.msra.mxu0 0.0
      %1280 = vmatpush.msra.mxu0 0.0
      %1281 = vmatpush.msra.mxu0 0.0
      %1282 = vmatpush.msra.mxu0 0.0
      %1283 = vmatpush.msra.mxu0 0.0
      %1284 = vmatpush.msra.mxu0 0.0
      %1285 = vmatpush.msra.mxu0 0.0
      %1286 = vmatpush.msra.mxu0 0.0
      %1287 = vmatpush.msra.mxu0 0.0
      %1288 = vmatpush.msra.mxu0 0.0
      %1289 = vmatpush.msra.mxu0 0.0
      %1290 = vmatpush.msra.mxu0 0.0
      %1291 = vmatpush.msra.mxu0 %v1250
      %1292 = vmatmul.f32.gmra.mxu0 %v1254
      %v1293 = vpop.f32.mrf.mxu0
      %v1294 = vadd.f32 0.0, %v1293
      %1295 = vdwg.mxu0
      %v1296 = vadd.f32 %v1241, %v1274
      %v1297 = vadd.f32 %v1242, %v1294
      %v1298 = vmax.f32 %v1296, 0.0
      %v1299 = vmax.f32 %v1297, 0.0
      %v1302 = vrot.slane %v1299, 4
      %v1303 = vsel %vm237, %v1298, %v1302
      %1305 = vst [vmem:[%s170] sm:$0xff] %v1303
      %p1306 = scmp.lt.s32.totalorder %s14, 1
      %s1307 = scalar_select %p1306, %s14, 1
      %s1308 = smul.addr %s1307, 2
      %s1309 = smul.addr %s1308, 4
      %s1310 = scalar_lea.vmem %s3, %s1309
      // Predicated region
      $region33: #{fpn_head_forward.1} parent=31 // pred_check
        %p1311 = pneg %p100
      $region34: #{fpn_head_forward.1} parent=31 // pred_check_branch
        %1313 = sbr.rel (%p1311) target = $region36
      $region35: #{fpn_head_forward.1} parent=31 // pred_region
        _
      $region36: #{fpn_head_forward.1} parent=31 // pred_fallthru
        _
    $region32: #{fpn_head_forward.1} parent=5 // pred_fallthru
      _
    %p1314 = scmp.le.s32.totalorder 2, %s9
    // Predicated region
    $region37: #{fpn_head_forward.1} parent=5 // pred_check
      %p1315 = pneg %p1314
    $region38: #{fpn_head_forward.1} parent=5 // pred_check_branch
      %1317 = sbr.rel (%p1315) target = $region40
    $region39: #{fpn_head_forward.1} parent=5 // pred_region
      %s1318 = ssub.s32 %s9, 2
      // Predicated region
      $region41: #{fpn_head_forward.1} parent=39 // pred_check
        %p1319 = pneg %p106
      $region42: #{fpn_head_forward.1} parent=39 // pred_check_branch
        %1321 = sbr.rel (%p1319) target = $region44
      $region43: #{fpn_head_forward.1} parent=39 // pred_region
        %p1322 = scmp.lt.s32.totalorder %s15, 1
        %s1323 = scalar_select %p1322, %s15, 1
        %s1324 = smul.addr %s1323, 2
        %s1325 = smul.addr %s1324, 4
        %s1326 = scalar_lea.vmem %s3, %s1325
      $region44: #{fpn_head_forward.1} parent=39 // pred_fallthru
        _
    $region40: #{fpn_head_forward.1} parent=5 // pred_fallthru
      _
  $region6: #{fpn_head_forward.1} parent=0 // loop_footer
    %s13 = sadd.s32 1, %s9
  $region7: #{fpn_head_forward.1} parent=0 // loop_footer_branch
    %8 = sbr.rel target = $region3
  $region8: #{fpn_head_forward.1} parent=0 // loop_exit
    _

</llo_original>
